<compile_context>
chip_gen: v6e
topology: v6e:2x2x1
jax: 0.10.0
libtpu: 0.0.40
codegen_flags: <defaults>
</compile_context>

<pallas_src>
import math

import jax
import jax.numpy as jnp
from jax.experimental import pallas as pl
from jax.experimental.pallas import tpu as pltpu

_LANE = 128
_SUBLANE = 8
_INV_SQRT2 = 1.0 / math.sqrt(2.0)
_LN_EPS = 1e-5          # torch.nn.LayerNorm default
_MAX_BATCH_TILE = 512   # rows per grid step (amortizes ~0.35 us/step overhead)


def _round_up(n, m):
    return ((n + m - 1) // m) * m


def _pad2(a, rows, cols):
    return jnp.pad(a, ((0, rows - a.shape[0]), (0, cols - a.shape[1])))


def _nbytes(a):
    return a.size * jnp.dtype(a.dtype).itemsize


def _num_tensorcores():
    """Best-effort TensorCores-per-chip (v7x has 2; v5e/v6e have 1)."""
    try:
        kind = jax.devices()[0].device_kind.lower()
    except Exception:
        return 1
    return 2 if ("v7" in kind or "7x" in kind) else 1


_RESIDENT = lambda i: (0, 0)   # constant index_map -> parameter stays VMEM-resident


# ------------------------------- fused kernel ------------------------------- #

def _make_encoder_kernel(n_layers, layer_real_dims, use_tanh_gelu=False):
    """(Linear -> LayerNorm -> GELU) * n  ->  merged-head Linear.

    `layer_real_dims[i]` is the un-padded output width of layer i so the
    LayerNorm statistics normalize by the real feature count.
    """

    def gelu(x):
        if use_tanh_gelu:
            # TODO(synk): tanh GELU (EUP) is not bit-identical to torch's default
            # exact-erf GELU; only enable when parity is not required (v5e win).
            return 0.5 * x * (1.0 + jnp.tanh(
                0.7978845608028654 * (x + 0.044715 * x * x * x)))
        return 0.5 * x * (1.0 + jax.lax.erf(x * _INV_SQRT2))

    def kernel(*refs):
        x_ref = refs[0]
        layer_refs = refs[1:1 + 4 * n_layers]
        head_w_ref = refs[1 + 4 * n_layers]
        head_b_ref = refs[2 + 4 * n_layers]
        o_ref = refs[3 + 4 * n_layers]

        h = x_ref[...]                                       # (bt, in_dim) f32
        for li in range(n_layers):
            w = layer_refs[4 * li][...]                      # bf16 (k, out_p)
            b = layer_refs[4 * li + 1][...]                  # f32  (1, out_p)
            gamma = layer_refs[4 * li + 2][...]              # f32  (1, out_p)
            beta = layer_refs[4 * li + 3][...]               # f32  (1, out_p)
            inv_real = 1.0 / float(layer_real_dims[li])

            # Linear on the MXU: bf16 operands, f32 accumulation.  Padded
            # weight columns / bias lanes are zero, so padded lanes of z are 0.
            z = jnp.dot(h.astype(jnp.bfloat16), w,
                        preferred_element_type=jnp.float32) + b

            # LayerNorm over the real feature width.  Padded lanes of z are
            # exactly zero, so plain lane-sums already reduce the real width;
            # single-pass variance E[z^2] - mean^2 (no iota/mask needed).
            mean = jnp.sum(z, axis=-1, keepdims=True) * inv_real
            var = jnp.maximum(
                jnp.sum(z * z, axis=-1, keepdims=True) * inv_real - mean * mean,
                0.0)
            # gamma/beta are zero-padded, so hn's padded lanes stay exactly 0
            # (and GELU(0) = 0) -> the next matmul sees clean zeros.
            hn = (z - mean) * jax.lax.rsqrt(var + _LN_EPS) * gamma + beta

            h = gelu(hn)
            # Dropout(p=0.05): identity (eval-mode semantics).

        # Merged head [infer_w | infer_x]: one MXU push, lane-dense f32 store.
        o_ref[...] = (
            jnp.dot(h.astype(jnp.bfloat16), head_w_ref[...],
                    preferred_element_type=jnp.float32)
            + head_b_ref[...])

    return kernel


# ------------------------------ parameter init ------------------------------ #

def _init_linear(key, fan_in, fan_out):
    """torch.nn.Linear-style init.

    NOTE: weights stored as [in_features, out_features] (transpose of torch's
    [out, in]); any torch-checkpoint loading path must transpose.
    """
    kw, kb = jax.random.split(key)
    bound = 1.0 / math.sqrt(fan_in)
    w = jax.random.uniform(kw, (fan_in, fan_out), jnp.float32, -bound, bound)
    b = jax.random.uniform(kb, (1, fan_out), jnp.float32, -bound, bound)
    return w, b


def init_encoder_params(key, sizes, dimx, dimw):
    params = {"layers": []}
    keys = jax.random.split(key, len(sizes) - 1 + 2)
    for i in range(len(sizes) - 1):
        w, b = _init_linear(keys[i], sizes[i], sizes[i + 1])
        gamma = jnp.ones((1, sizes[i + 1]), jnp.float32)   # LayerNorm weight init
        beta = jnp.zeros((1, sizes[i + 1]), jnp.float32)   # LayerNorm bias init
        params["layers"].append((w, b, gamma, beta))
    params["infer_x"] = _init_linear(keys[-2], sizes[-1], dimx * 2)
    params["infer_w"] = _init_linear(keys[-1], sizes[-1], dimw * 2)
    return params


def pack_encoder_params(params, sizes, dimx, dimw, weight_dtype=jnp.bfloat16):
    """One-time packing: zero-pad feature dims to 128-lane multiples, store the
    matmul weights in bf16, and merge the two head projections into one matrix.

    The first layer keeps its real (un-padded) K so the raw input can be fed
    to the kernel without any host-side lane padding."""
    layers_p = []
    for i, (w, b, gamma, beta) in enumerate(params["layers"]):
        in_p = sizes[i] if i == 0 else _round_up(sizes[i], _LANE)
        out_p = _round_up(sizes[i + 1], _LANE)
        layers_p.append((
            _pad2(w, in_p, out_p).astype(weight_dtype),
            _pad2(b, 1, out_p),
            _pad2(gamma, 1, out_p),
            _pad2(beta, 1, out_p),
        ))

    ww, wb = params["infer_w"]
    xw, xb = params["infer_x"]
    head_w = jnp.concatenate([ww, xw], axis=1)            # [last, 2*dimw + 2*dimx]
    head_b = jnp.concatenate([wb, xb], axis=1)
    last_p = _round_up(sizes[-1], _LANE) if len(sizes) > 1 else sizes[0]
    head_p = _round_up(2 * dimw + 2 * dimx, _LANE)

    return {
        "layers": layers_p,
        "head_w": _pad2(head_w, last_p, head_p).astype(weight_dtype),
        "head_b": _pad2(head_b, 1, head_p),
        "sizes": tuple(int(s) for s in sizes),
        "dimx": int(dimx),
        "dimw": int(dimw),
    }


# -------------------------------- encoder fwd -------------------------------- #

def encoder_forward(packed, inp):
    """Returns ((w_mu, w_logvar), (x_mu, x_logvar)), matching the torch module."""
    sizes = packed["sizes"]
    dimx, dimw = packed["dimx"], packed["dimw"]
    n_layers = len(sizes) - 1
    in_dim = sizes[0]
    head_p = packed["head_w"].shape[1]

    batch = inp.shape[0]
    # Batch tiling: big tiles amortize the fixed per-grid-step cost; on v7x,
    # shrink just enough that the "parallel" batch axis has >= 2 grid steps so
    # both TensorCores get work.
    bt = min(_round_up(batch, _SUBLANE), _MAX_BATCH_TILE)
    num_tc = _num_tensorcores()
    if num_tc > 1 and batch > _SUBLANE:
        per_core = _round_up(-(-batch // num_tc), _SUBLANE)
        bt = min(bt, per_core)
    bp = _round_up(batch, bt)

    x = inp.astype(jnp.float32)
    if bp != batch:
        x = jnp.pad(x, ((0, bp - batch), (0, 0)))   # rows only; no lane padding

    flat_inputs = [x]
    for layer in packed["layers"]:
        flat_inputs.extend(layer)
    flat_inputs.extend([packed["head_w"], packed["head_b"]])

    kernel = _make_encoder_kernel(n_layers, tuple(sizes[1:]))

    # Explicit VMEM budget: resident params (conservatively x2), double-buffered
    # I/O tiles, plus activation headroom; clamp to [32 MiB, 64 MiB].
    param_bytes = sum(_nbytes(a) for a in flat_inputs[1:])
    io_bytes = 2 * bt * in_dim * 4 + 2 * bt * head_p * 4
    widest = max([head_p] + [layer[0].shape[1] for layer in packed["layers"]])
    act_bytes = 4 * bt * widest * 4
    vmem_limit = int(min(max(2 * (2 * param_bytes + io_bytes + act_bytes),
                             32 << 20), 64 << 20))

    def build_call(single_buffer_params):
        def pspec(shape):
            if single_buffer_params:
                # Constant index_map -> one buffer is enough; halves the
                # parameters' VMEM footprint vs default double-buffering.
                return pl.BlockSpec(shape, _RESIDENT, pipeline_mode=pl.Buffered(1))
            return pl.BlockSpec(shape, _RESIDENT)

        in_specs = [pl.BlockSpec((bt, in_dim), lambda i: (i, 0))]
        in_specs += [pspec(a.shape) for a in flat_inputs[1:]]
        return pl.pallas_call(
            kernel,
            out_shape=jax.ShapeDtypeStruct((bp, head_p), jnp.float32),
            grid=(bp // bt,),
            in_specs=in_specs,
            out_specs=pl.BlockSpec((bt, head_p), lambda i: (i, 0)),
            compiler_params=pltpu.CompilerParams(
                dimension_semantics=("parallel",),
                vmem_limit_bytes=vmem_limit),
        )

    try:
        out_pad = build_call(True)(*flat_inputs)
    except Exception:
        # Fallback if this JAX build rejects pl.Buffered(1) on resident specs.
        out_pad = build_call(False)(*flat_inputs)

    out = out_pad[:batch]
    w_mu = out[:, :dimw]
    w_logvar = out[:, dimw:2 * dimw]
    x_mu = out[:, 2 * dimw:2 * dimw + dimx]
    x_logvar = out[:, 2 * dimw + dimx:2 * dimw + 2 * dimx]
    return ((w_mu, w_logvar), (x_mu, x_logvar))


# ------------------------------ pure-JAX reference --------------------------- #

def _reference_forward(params, inp, dimx, dimw, dot_dtype=jnp.float32):
    """Torch-semantics reference.  With dot_dtype=bf16 it mirrors the kernel's
    matmul contract (bf16 operands, f32 accumulation) for a tight check."""

    def mm(a, b):
        if dot_dtype == jnp.float32:
            return jnp.dot(a, b, precision=jax.lax.Precision.HIGHEST)
        return jnp.dot(a.astype(dot_dtype), b.astype(dot_dtype),
                       preferred_element_type=jnp.float32)

    x = inp
    for (w, b, gamma, beta) in params["layers"]:
        h = mm(x, w) + b
        mean = jnp.mean(h, axis=-1, keepdims=True)
        var = jnp.mean(jnp.square(h - mean), axis=-1, keepdims=True)
        hn = (h - mean) * jax.lax.rsqrt(var + _LN_EPS) * gamma + beta
        x = 0.5 * hn * (1.0 + jax.lax.erf(hn * _INV_SQRT2))
    ww, wb = params["infer_w"]
    xw, xb = params["infer_x"]
    w_out = mm(x, ww) + wb
    x_out = mm(x, xw) + xb
    return ((w_out[:, :dimw], w_out[:, dimw:]),
            (x_out[:, :dimx], x_out[:, dimx:]))


# ------------------------------------ main ----------------------------------- #

if __name__ == "__main__":
    sizes = [32, 64, 32]   # Encoder MLP sizes
    dimx = 8
    dimw = 4
    batch = 8

    root = jax.random.PRNGKey(0)
    k_params, k_input = jax.random.split(root)

    params = init_encoder_params(k_params, sizes, dimx, dimw)
    packed = pack_encoder_params(params, sizes, dimx, dimw)
    x = jax.random.normal(k_input, (batch, sizes[0]), jnp.float32)

    (w_mu, w_logvar), (x_mu, x_logvar) = encoder_forward(packed, x)
    jax.block_until_ready((w_mu, w_logvar, x_mu, x_logvar))

    assert w_mu.shape == (batch, dimw) and w_logvar.shape == (batch, dimw)
    assert x_mu.shape == (batch, dimx) and x_logvar.shape == (batch, dimx)

    # Primary check: reference using the same bf16-input / f32-accumulate
    # matmul contract as the kernel -> tight agreement expected.
    (rw_mu, rw_lv), (rx_mu, rx_lv) = _reference_forward(
        params, x, dimx, dimw, dot_dtype=jnp.bfloat16)
    for got, ref in ((w_mu, rw_mu), (w_logvar, rw_lv),
                     (x_mu, rx_mu), (x_logvar, rx_lv)):
        assert jnp.allclose(got, ref, rtol=2e-2, atol=2e-2), (
            float(jnp.max(jnp.abs(got - ref))))

    # Numerics guard vs a full-f32 HIGHEST-precision reference (loose: bf16
    # MXU inputs trade a little precision for native MXU rate).
    (fw_mu, fw_lv), (fx_mu, fx_lv) = _reference_forward(
        params, x, dimx, dimw, dot_dtype=jnp.float32)
    for got, ref in ((w_mu, fw_mu), (w_logvar, fw_lv),
                     (x_mu, fx_mu), (x_logvar, fx_lv)):
        assert jnp.allclose(got, ref, rtol=1e-1, atol=1e-1), (
            float(jnp.max(jnp.abs(got - ref))))

    print("KERNEL_OK")
</pallas_src>

<mosaic_0001>
module attributes {stable_mosaic.version = 11 : i64} {
  func.func @kernel(%arg0: i32, %arg1: memref<8x32xf32, #tpu.memory_space<vmem>>, %arg2: memref<32x128xbf16, #tpu.memory_space<vmem>>, %arg3: memref<1x128xf32, #tpu.memory_space<vmem>>, %arg4: memref<1x128xf32, #tpu.memory_space<vmem>>, %arg5: memref<1x128xf32, #tpu.memory_space<vmem>>, %arg6: memref<128x128xbf16, #tpu.memory_space<vmem>>, %arg7: memref<1x128xf32, #tpu.memory_space<vmem>>, %arg8: memref<1x128xf32, #tpu.memory_space<vmem>>, %arg9: memref<1x128xf32, #tpu.memory_space<vmem>>, %arg10: memref<128x128xbf16, #tpu.memory_space<vmem>>, %arg11: memref<1x128xf32, #tpu.memory_space<vmem>>, %arg12: memref<8x128xf32, #tpu.memory_space<vmem>>) attributes {dimension_semantics = [#tpu.dimension_semantics<parallel>], iteration_bounds = array<i64: 1>, scalar_prefetch = 0 : i64, scratch_operands = 0 : i64, tpu.core_type = #tpu.core_type<tc>, window_params = [{transform_indices = @transform_0, window_bounds = array<i64: 8, 32>}, {pipeline_mode = #tpu.pipeline_mode<synchronous>, transform_indices = @transform_1, window_bounds = array<i64: 32, 128>}, {pipeline_mode = #tpu.pipeline_mode<synchronous>, transform_indices = @transform_2, window_bounds = array<i64: 1, 128>}, {pipeline_mode = #tpu.pipeline_mode<synchronous>, transform_indices = @transform_3, window_bounds = array<i64: 1, 128>}, {pipeline_mode = #tpu.pipeline_mode<synchronous>, transform_indices = @transform_4, window_bounds = array<i64: 1, 128>}, {pipeline_mode = #tpu.pipeline_mode<synchronous>, transform_indices = @transform_5, window_bounds = array<i64: 128, 128>}, {pipeline_mode = #tpu.pipeline_mode<synchronous>, transform_indices = @transform_6, window_bounds = array<i64: 1, 128>}, {pipeline_mode = #tpu.pipeline_mode<synchronous>, transform_indices = @transform_7, window_bounds = array<i64: 1, 128>}, {pipeline_mode = #tpu.pipeline_mode<synchronous>, transform_indices = @transform_8, window_bounds = array<i64: 1, 128>}, {pipeline_mode = #tpu.pipeline_mode<synchronous>, transform_indices = @transform_9, window_bounds = array<i64: 128, 128>}, {pipeline_mode = #tpu.pipeline_mode<synchronous>, transform_indices = @transform_10, window_bounds = array<i64: 1, 128>}, {transform_indices = @transform_11, window_bounds = array<i64: 8, 128>}]} {
    %c0 = arith.constant 0 : index
    %c0_0 = arith.constant 0 : index
    %0 = vector.load %arg1[%c0, %c0_0] : memref<8x32xf32, #tpu.memory_space<vmem>>, vector<8x32xf32>
    %c0_1 = arith.constant 0 : index
    %c0_2 = arith.constant 0 : index
    %1 = vector.load %arg2[%c0_1, %c0_2] : memref<32x128xbf16, #tpu.memory_space<vmem>>, vector<32x128xbf16>
    %c0_3 = arith.constant 0 : index
    %c0_4 = arith.constant 0 : index
    %2 = vector.load %arg3[%c0_3, %c0_4] : memref<1x128xf32, #tpu.memory_space<vmem>>, vector<1x128xf32>
    %c0_5 = arith.constant 0 : index
    %c0_6 = arith.constant 0 : index
    %3 = vector.load %arg4[%c0_5, %c0_6] : memref<1x128xf32, #tpu.memory_space<vmem>>, vector<1x128xf32>
    %c0_7 = arith.constant 0 : index
    %c0_8 = arith.constant 0 : index
    %4 = vector.load %arg5[%c0_7, %c0_8] : memref<1x128xf32, #tpu.memory_space<vmem>>, vector<1x128xf32>
    %5 = arith.truncf %0 : vector<8x32xf32> to vector<8x32xbf16>
    %cst = arith.constant dense<0.000000e+00> : vector<8x128xf32>
    %6 = tpu.matmul %5, %1, %cst {dimension_numbers = #tpu.dot_dimension_numbers<[1], [0], [0], [1], [0, 0, 1, 1], [], []>} : vector<8x32xbf16>, vector<32x128xbf16>, vector<8x128xf32> -> vector<8x128xf32>
    %7 = vector.broadcast %2 : vector<1x128xf32> to vector<8x128xf32>
    %8 = arith.addf %6, %7 : vector<8x128xf32>
    %cst_9 = arith.constant dense<0.000000e+00> : vector<8xf32>
    %9 = vector.multi_reduction <add>, %8, %cst_9 [1] : vector<8x128xf32> to vector<8xf32>
    %10 = vector.shape_cast %9 : vector<8xf32> to vector<8x1xf32>
    %cst_10 = arith.constant 1.562500e-02 : f32
    %11 = vector.broadcast %cst_10 : f32 to vector<8x1xf32>
    %12 = arith.mulf %10, %11 : vector<8x1xf32>
    %13 = arith.mulf %8, %8 : vector<8x128xf32>
    %cst_11 = arith.constant dense<0.000000e+00> : vector<8xf32>
    %14 = vector.multi_reduction <add>, %13, %cst_11 [1] : vector<8x128xf32> to vector<8xf32>
    %15 = vector.shape_cast %14 : vector<8xf32> to vector<8x1xf32>
    %cst_12 = arith.constant 1.562500e-02 : f32
    %16 = vector.broadcast %cst_12 : f32 to vector<8x1xf32>
    %17 = arith.mulf %15, %16 : vector<8x1xf32>
    %18 = arith.mulf %12, %12 : vector<8x1xf32>
    %19 = arith.subf %17, %18 : vector<8x1xf32>
    %cst_13 = arith.constant 0.000000e+00 : f32
    %20 = vector.broadcast %cst_13 : f32 to vector<8x1xf32>
    %21 = arith.maximumf %19, %20 : vector<8x1xf32>
    %22 = vector.broadcast %12 : vector<8x1xf32> to vector<8x128xf32>
    %23 = arith.subf %8, %22 : vector<8x128xf32>
    %cst_14 = arith.constant 9.99999974E-6 : f32
    %24 = vector.broadcast %cst_14 : f32 to vector<8x1xf32>
    %25 = arith.addf %21, %24 : vector<8x1xf32>
    %26 = math.rsqrt %25 : vector<8x1xf32>
    %27 = vector.broadcast %26 : vector<8x1xf32> to vector<8x128xf32>
    %28 = arith.mulf %23, %27 : vector<8x128xf32>
    %29 = vector.broadcast %3 : vector<1x128xf32> to vector<8x128xf32>
    %30 = arith.mulf %28, %29 : vector<8x128xf32>
    %31 = vector.broadcast %4 : vector<1x128xf32> to vector<8x128xf32>
    %32 = arith.addf %30, %31 : vector<8x128xf32>
    %cst_15 = arith.constant 5.000000e-01 : f32
    %33 = vector.broadcast %cst_15 : f32 to vector<8x128xf32>
    %34 = arith.mulf %33, %32 : vector<8x128xf32>
    %cst_16 = arith.constant 0.707106769 : f32
    %35 = vector.broadcast %cst_16 : f32 to vector<8x128xf32>
    %36 = arith.mulf %32, %35 : vector<8x128xf32>
    %37 = math.erf %36 : vector<8x128xf32>
    %cst_17 = arith.constant 1.000000e+00 : f32
    %38 = vector.broadcast %cst_17 : f32 to vector<8x128xf32>
    %39 = arith.addf %38, %37 : vector<8x128xf32>
    %40 = arith.mulf %34, %39 : vector<8x128xf32>
    %c0_18 = arith.constant 0 : index
    %c0_19 = arith.constant 0 : index
    %41 = vector.load %arg6[%c0_18, %c0_19] : memref<128x128xbf16, #tpu.memory_space<vmem>>, vector<128x128xbf16>
    %c0_20 = arith.constant 0 : index
    %c0_21 = arith.constant 0 : index
    %42 = vector.load %arg7[%c0_20, %c0_21] : memref<1x128xf32, #tpu.memory_space<vmem>>, vector<1x128xf32>
    %c0_22 = arith.constant 0 : index
    %c0_23 = arith.constant 0 : index
    %43 = vector.load %arg8[%c0_22, %c0_23] : memref<1x128xf32, #tpu.memory_space<vmem>>, vector<1x128xf32>
    %c0_24 = arith.constant 0 : index
    %c0_25 = arith.constant 0 : index
    %44 = vector.load %arg9[%c0_24, %c0_25] : memref<1x128xf32, #tpu.memory_space<vmem>>, vector<1x128xf32>
    %45 = arith.truncf %40 : vector<8x128xf32> to vector<8x128xbf16>
    %cst_26 = arith.constant dense<0.000000e+00> : vector<8x128xf32>
    %46 = tpu.matmul %45, %41, %cst_26 {dimension_numbers = #tpu.dot_dimension_numbers<[1], [0], [0], [1], [0, 0, 1, 1], [], []>} : vector<8x128xbf16>, vector<128x128xbf16>, vector<8x128xf32> -> vector<8x128xf32>
    %47 = vector.broadcast %42 : vector<1x128xf32> to vector<8x128xf32>
    %48 = arith.addf %46, %47 : vector<8x128xf32>
    %cst_27 = arith.constant dense<0.000000e+00> : vector<8xf32>
    %49 = vector.multi_reduction <add>, %48, %cst_27 [1] : vector<8x128xf32> to vector<8xf32>
    %50 = vector.shape_cast %49 : vector<8xf32> to vector<8x1xf32>
    %cst_28 = arith.constant 3.125000e-02 : f32
    %51 = vector.broadcast %cst_28 : f32 to vector<8x1xf32>
    %52 = arith.mulf %50, %51 : vector<8x1xf32>
    %53 = arith.mulf %48, %48 : vector<8x128xf32>
    %cst_29 = arith.constant dense<0.000000e+00> : vector<8xf32>
    %54 = vector.multi_reduction <add>, %53, %cst_29 [1] : vector<8x128xf32> to vector<8xf32>
    %55 = vector.shape_cast %54 : vector<8xf32> to vector<8x1xf32>
    %cst_30 = arith.constant 3.125000e-02 : f32
    %56 = vector.broadcast %cst_30 : f32 to vector<8x1xf32>
    %57 = arith.mulf %55, %56 : vector<8x1xf32>
    %58 = arith.mulf %52, %52 : vector<8x1xf32>
    %59 = arith.subf %57, %58 : vector<8x1xf32>
    %cst_31 = arith.constant 0.000000e+00 : f32
    %60 = vector.broadcast %cst_31 : f32 to vector<8x1xf32>
    %61 = arith.maximumf %59, %60 : vector<8x1xf32>
    %62 = vector.broadcast %52 : vector<8x1xf32> to vector<8x128xf32>
    %63 = arith.subf %48, %62 : vector<8x128xf32>
    %cst_32 = arith.constant 9.99999974E-6 : f32
    %64 = vector.broadcast %cst_32 : f32 to vector<8x1xf32>
    %65 = arith.addf %61, %64 : vector<8x1xf32>
    %66 = math.rsqrt %65 : vector<8x1xf32>
    %67 = vector.broadcast %66 : vector<8x1xf32> to vector<8x128xf32>
    %68 = arith.mulf %63, %67 : vector<8x128xf32>
    %69 = vector.broadcast %43 : vector<1x128xf32> to vector<8x128xf32>
    %70 = arith.mulf %68, %69 : vector<8x128xf32>
    %71 = vector.broadcast %44 : vector<1x128xf32> to vector<8x128xf32>
    %72 = arith.addf %70, %71 : vector<8x128xf32>
    %cst_33 = arith.constant 5.000000e-01 : f32
    %73 = vector.broadcast %cst_33 : f32 to vector<8x128xf32>
    %74 = arith.mulf %73, %72 : vector<8x128xf32>
    %cst_34 = arith.constant 0.707106769 : f32
    %75 = vector.broadcast %cst_34 : f32 to vector<8x128xf32>
    %76 = arith.mulf %72, %75 : vector<8x128xf32>
    %77 = math.erf %76 : vector<8x128xf32>
    %cst_35 = arith.constant 1.000000e+00 : f32
    %78 = vector.broadcast %cst_35 : f32 to vector<8x128xf32>
    %79 = arith.addf %78, %77 : vector<8x128xf32>
    %80 = arith.mulf %74, %79 : vector<8x128xf32>
    %81 = arith.truncf %80 : vector<8x128xf32> to vector<8x128xbf16>
    %c0_36 = arith.constant 0 : index
    %c0_37 = arith.constant 0 : index
    %82 = vector.load %arg10[%c0_36, %c0_37] : memref<128x128xbf16, #tpu.memory_space<vmem>>, vector<128x128xbf16>
    %cst_38 = arith.constant dense<0.000000e+00> : vector<8x128xf32>
    %83 = tpu.matmul %81, %82, %cst_38 {dimension_numbers = #tpu.dot_dimension_numbers<[1], [0], [0], [1], [0, 0, 1, 1], [], []>} : vector<8x128xbf16>, vector<128x128xbf16>, vector<8x128xf32> -> vector<8x128xf32>
    %c0_39 = arith.constant 0 : index
    %c0_40 = arith.constant 0 : index
    %84 = vector.load %arg11[%c0_39, %c0_40] : memref<1x128xf32, #tpu.memory_space<vmem>>, vector<1x128xf32>
    %85 = vector.broadcast %84 : vector<1x128xf32> to vector<8x128xf32>
    %86 = arith.addf %83, %85 : vector<8x128xf32>
    %c0_41 = arith.constant 0 : index
    %c0_42 = arith.constant 0 : index
    %87 = vector.load %arg12[%c0_41, %c0_42] : memref<8x128xf32, #tpu.memory_space<vmem>>, vector<8x128xf32>
    tpu.vector_store %arg12[%c0_41, %c0_42], %86 {strides = array<i32>} : memref<8x128xf32, #tpu.memory_space<vmem>>, vector<8x128xf32>,
    return
  }
  func.func @transform_0(%arg0: i32) -> (i32, i32) {
    %c0_i32 = arith.constant 0 : i32
    %c0_i32_0 = arith.constant 0 : i32
    return %arg0, %c0_i32 : i32, i32
  }
  func.func @transform_1(%arg0: i32) -> (i32, i32) {
    %c0_i32 = arith.constant 0 : i32
    %c0_i32_0 = arith.constant 0 : i32
    %c0_i32_1 = arith.constant 0 : i32
    return %c0_i32, %c0_i32_0 : i32, i32
  }
  func.func @transform_2(%arg0: i32) -> (i32, i32) {
    %c0_i32 = arith.constant 0 : i32
    %c0_i32_0 = arith.constant 0 : i32
    %c0_i32_1 = arith.constant 0 : i32
    return %c0_i32, %c0_i32_0 : i32, i32
  }
  func.func @transform_3(%arg0: i32) -> (i32, i32) {
    %c0_i32 = arith.constant 0 : i32
    %c0_i32_0 = arith.constant 0 : i32
    %c0_i32_1 = arith.constant 0 : i32
    return %c0_i32, %c0_i32_0 : i32, i32
  }
  func.func @transform_4(%arg0: i32) -> (i32, i32) {
    %c0_i32 = arith.constant 0 : i32
    %c0_i32_0 = arith.constant 0 : i32
    %c0_i32_1 = arith.constant 0 : i32
    return %c0_i32, %c0_i32_0 : i32, i32
  }
  func.func @transform_5(%arg0: i32) -> (i32, i32) {
    %c0_i32 = arith.constant 0 : i32
    %c0_i32_0 = arith.constant 0 : i32
    %c0_i32_1 = arith.constant 0 : i32
    return %c0_i32, %c0_i32_0 : i32, i32
  }
  func.func @transform_6(%arg0: i32) -> (i32, i32) {
    %c0_i32 = arith.constant 0 : i32
    %c0_i32_0 = arith.constant 0 : i32
    %c0_i32_1 = arith.constant 0 : i32
    return %c0_i32, %c0_i32_0 : i32, i32
  }
  func.func @transform_7(%arg0: i32) -> (i32, i32) {
    %c0_i32 = arith.constant 0 : i32
    %c0_i32_0 = arith.constant 0 : i32
    %c0_i32_1 = arith.constant 0 : i32
    return %c0_i32, %c0_i32_0 : i32, i32
  }
  func.func @transform_8(%arg0: i32) -> (i32, i32) {
    %c0_i32 = arith.constant 0 : i32
    %c0_i32_0 = arith.constant 0 : i32
    %c0_i32_1 = arith.constant 0 : i32
    return %c0_i32, %c0_i32_0 : i32, i32
  }
  func.func @transform_9(%arg0: i32) -> (i32, i32) {
    %c0_i32 = arith.constant 0 : i32
    %c0_i32_0 = arith.constant 0 : i32
    %c0_i32_1 = arith.constant 0 : i32
    return %c0_i32, %c0_i32_0 : i32, i32
  }
  func.func @transform_10(%arg0: i32) -> (i32, i32) {
    %c0_i32 = arith.constant 0 : i32
    %c0_i32_0 = arith.constant 0 : i32
    %c0_i32_1 = arith.constant 0 : i32
    return %c0_i32, %c0_i32_0 : i32, i32
  }
  func.func @transform_11(%arg0: i32) -> (i32, i32) {
    %c0_i32 = arith.constant 0 : i32
    %c0_i32_0 = arith.constant 0 : i32
    return %arg0, %c0_i32 : i32, i32
  }
}

module attributes {stable_mosaic.version = 11 : i64} {
  func.func @kernel(%arg0: i32, %arg1: memref<8x32xf32, #tpu.memory_space<vmem>>, %arg2: memref<32x128xbf16, #tpu.memory_space<vmem>>, %arg3: memref<1x128xf32, #tpu.memory_space<vmem>>, %arg4: memref<1x128xf32, #tpu.memory_space<vmem>>, %arg5: memref<1x128xf32, #tpu.memory_space<vmem>>, %arg6: memref<128x128xbf16, #tpu.memory_space<vmem>>, %arg7: memref<1x128xf32, #tpu.memory_space<vmem>>, %arg8: memref<1x128xf32, #tpu.memory_space<vmem>>, %arg9: memref<1x128xf32, #tpu.memory_space<vmem>>, %arg10: memref<128x128xbf16, #tpu.memory_space<vmem>>, %arg11: memref<1x128xf32, #tpu.memory_space<vmem>>, %arg12: memref<8x128xf32, #tpu.memory_space<vmem>>) attributes {dimension_semantics = [#tpu.dimension_semantics<parallel>], iteration_bounds = array<i64: 1>, scalar_prefetch = 0 : i64, scratch_operands = 0 : i64, tpu.core_type = #tpu.core_type<tc>, window_params = [{transform_indices = @transform_0, window_bounds = array<i64: 8, 32>}, {pipeline_mode = #tpu.pipeline_mode<synchronous>, transform_indices = @transform_1, window_bounds = array<i64: 32, 128>}, {pipeline_mode = #tpu.pipeline_mode<synchronous>, transform_indices = @transform_2, window_bounds = array<i64: 1, 128>}, {pipeline_mode = #tpu.pipeline_mode<synchronous>, transform_indices = @transform_3, window_bounds = array<i64: 1, 128>}, {pipeline_mode = #tpu.pipeline_mode<synchronous>, transform_indices = @transform_4, window_bounds = array<i64: 1, 128>}, {pipeline_mode = #tpu.pipeline_mode<synchronous>, transform_indices = @transform_5, window_bounds = array<i64: 128, 128>}, {pipeline_mode = #tpu.pipeline_mode<synchronous>, transform_indices = @transform_6, window_bounds = array<i64: 1, 128>}, {pipeline_mode = #tpu.pipeline_mode<synchronous>, transform_indices = @transform_7, window_bounds = array<i64: 1, 128>}, {pipeline_mode = #tpu.pipeline_mode<synchronous>, transform_indices = @transform_8, window_bounds = array<i64: 1, 128>}, {pipeline_mode = #tpu.pipeline_mode<synchronous>, transform_indices = @transform_9, window_bounds = array<i64: 128, 128>}, {pipeline_mode = #tpu.pipeline_mode<synchronous>, transform_indices = @transform_10, window_bounds = array<i64: 1, 128>}, {transform_indices = @transform_11, window_bounds = array<i64: 8, 128>}]} {
    %c0 = arith.constant 0 : index
    %c0_0 = arith.constant 0 : index
    %0 = vector.load %arg1[%c0, %c0_0] : memref<8x32xf32, #tpu.memory_space<vmem>>, vector<8x32xf32>
    %c0_1 = arith.constant 0 : index
    %c0_2 = arith.constant 0 : index
    %1 = vector.load %arg2[%c0_1, %c0_2] : memref<32x128xbf16, #tpu.memory_space<vmem>>, vector<32x128xbf16>
    %c0_3 = arith.constant 0 : index
    %c0_4 = arith.constant 0 : index
    %2 = vector.load %arg3[%c0_3, %c0_4] : memref<1x128xf32, #tpu.memory_space<vmem>>, vector<1x128xf32>
    %c0_5 = arith.constant 0 : index
    %c0_6 = arith.constant 0 : index
    %3 = vector.load %arg4[%c0_5, %c0_6] : memref<1x128xf32, #tpu.memory_space<vmem>>, vector<1x128xf32>
    %c0_7 = arith.constant 0 : index
    %c0_8 = arith.constant 0 : index
    %4 = vector.load %arg5[%c0_7, %c0_8] : memref<1x128xf32, #tpu.memory_space<vmem>>, vector<1x128xf32>
    %5 = arith.truncf %0 : vector<8x32xf32> to vector<8x32xbf16>
    %cst = arith.constant dense<0.000000e+00> : vector<8x128xf32>
    %6 = tpu.matmul %5, %1, %cst {dimension_numbers = #tpu.dot_dimension_numbers<[1], [0], [0], [1], [0, 0, 1, 1], [], []>} : vector<8x32xbf16>, vector<32x128xbf16>, vector<8x128xf32> -> vector<8x128xf32>
    %7 = vector.broadcast %2 : vector<1x128xf32> to vector<8x128xf32>
    %8 = arith.addf %6, %7 : vector<8x128xf32>
    %cst_9 = arith.constant dense<0.000000e+00> : vector<8xf32>
    %9 = vector.multi_reduction <add>, %8, %cst_9 [1] : vector<8x128xf32> to vector<8xf32>
    %10 = vector.shape_cast %9 : vector<8xf32> to vector<8x1xf32>
    %cst_10 = arith.constant 1.562500e-02 : f32
    %11 = vector.broadcast %cst_10 : f32 to vector<8x1xf32>
    %12 = arith.mulf %10, %11 : vector<8x1xf32>
    %13 = arith.mulf %8, %8 : vector<8x128xf32>
    %cst_11 = arith.constant dense<0.000000e+00> : vector<8xf32>
    %14 = vector.multi_reduction <add>, %13, %cst_11 [1] : vector<8x128xf32> to vector<8xf32>
    %15 = vector.shape_cast %14 : vector<8xf32> to vector<8x1xf32>
    %cst_12 = arith.constant 1.562500e-02 : f32
    %16 = vector.broadcast %cst_12 : f32 to vector<8x1xf32>
    %17 = arith.mulf %15, %16 : vector<8x1xf32>
    %18 = arith.mulf %12, %12 : vector<8x1xf32>
    %19 = arith.subf %17, %18 : vector<8x1xf32>
    %cst_13 = arith.constant 0.000000e+00 : f32
    %20 = vector.broadcast %cst_13 : f32 to vector<8x1xf32>
    %21 = arith.maximumf %19, %20 : vector<8x1xf32>
    %22 = vector.broadcast %12 : vector<8x1xf32> to vector<8x128xf32>
    %23 = arith.subf %8, %22 : vector<8x128xf32>
    %cst_14 = arith.constant 9.99999974E-6 : f32
    %24 = vector.broadcast %cst_14 : f32 to vector<8x1xf32>
    %25 = arith.addf %21, %24 : vector<8x1xf32>
    %26 = math.rsqrt %25 : vector<8x1xf32>
    %27 = vector.broadcast %26 : vector<8x1xf32> to vector<8x128xf32>
    %28 = arith.mulf %23, %27 : vector<8x128xf32>
    %29 = vector.broadcast %3 : vector<1x128xf32> to vector<8x128xf32>
    %30 = arith.mulf %28, %29 : vector<8x128xf32>
    %31 = vector.broadcast %4 : vector<1x128xf32> to vector<8x128xf32>
    %32 = arith.addf %30, %31 : vector<8x128xf32>
    %cst_15 = arith.constant 5.000000e-01 : f32
    %33 = vector.broadcast %cst_15 : f32 to vector<8x128xf32>
    %34 = arith.mulf %33, %32 : vector<8x128xf32>
    %cst_16 = arith.constant 0.707106769 : f32
    %35 = vector.broadcast %cst_16 : f32 to vector<8x128xf32>
    %36 = arith.mulf %32, %35 : vector<8x128xf32>
    %37 = math.erf %36 : vector<8x128xf32>
    %cst_17 = arith.constant 1.000000e+00 : f32
    %38 = vector.broadcast %cst_17 : f32 to vector<8x128xf32>
    %39 = arith.addf %38, %37 : vector<8x128xf32>
    %40 = arith.mulf %34, %39 : vector<8x128xf32>
    %c0_18 = arith.constant 0 : index
    %c0_19 = arith.constant 0 : index
    %41 = vector.load %arg6[%c0_18, %c0_19] : memref<128x128xbf16, #tpu.memory_space<vmem>>, vector<128x128xbf16>
    %c0_20 = arith.constant 0 : index
    %c0_21 = arith.constant 0 : index
    %42 = vector.load %arg7[%c0_20, %c0_21] : memref<1x128xf32, #tpu.memory_space<vmem>>, vector<1x128xf32>
    %c0_22 = arith.constant 0 : index
    %c0_23 = arith.constant 0 : index
    %43 = vector.load %arg8[%c0_22, %c0_23] : memref<1x128xf32, #tpu.memory_space<vmem>>, vector<1x128xf32>
    %c0_24 = arith.constant 0 : index
    %c0_25 = arith.constant 0 : index
    %44 = vector.load %arg9[%c0_24, %c0_25] : memref<1x128xf32, #tpu.memory_space<vmem>>, vector<1x128xf32>
    %45 = arith.truncf %40 : vector<8x128xf32> to vector<8x128xbf16>
    %cst_26 = arith.constant dense<0.000000e+00> : vector<8x128xf32>
    %46 = tpu.matmul %45, %41, %cst_26 {dimension_numbers = #tpu.dot_dimension_numbers<[1], [0], [0], [1], [0, 0, 1, 1], [], []>} : vector<8x128xbf16>, vector<128x128xbf16>, vector<8x128xf32> -> vector<8x128xf32>
    %47 = vector.broadcast %42 : vector<1x128xf32> to vector<8x128xf32>
    %48 = arith.addf %46, %47 : vector<8x128xf32>
    %cst_27 = arith.constant dense<0.000000e+00> : vector<8xf32>
    %49 = vector.multi_reduction <add>, %48, %cst_27 [1] : vector<8x128xf32> to vector<8xf32>
    %50 = vector.shape_cast %49 : vector<8xf32> to vector<8x1xf32>
    %cst_28 = arith.constant 3.125000e-02 : f32
    %51 = vector.broadcast %cst_28 : f32 to vector<8x1xf32>
    %52 = arith.mulf %50, %51 : vector<8x1xf32>
    %53 = arith.mulf %48, %48 : vector<8x128xf32>
    %cst_29 = arith.constant dense<0.000000e+00> : vector<8xf32>
    %54 = vector.multi_reduction <add>, %53, %cst_29 [1] : vector<8x128xf32> to vector<8xf32>
    %55 = vector.shape_cast %54 : vector<8xf32> to vector<8x1xf32>
    %cst_30 = arith.constant 3.125000e-02 : f32
    %56 = vector.broadcast %cst_30 : f32 to vector<8x1xf32>
    %57 = arith.mulf %55, %56 : vector<8x1xf32>
    %58 = arith.mulf %52, %52 : vector<8x1xf32>
    %59 = arith.subf %57, %58 : vector<8x1xf32>
    %cst_31 = arith.constant 0.000000e+00 : f32
    %60 = vector.broadcast %cst_31 : f32 to vector<8x1xf32>
    %61 = arith.maximumf %59, %60 : vector<8x1xf32>
    %62 = vector.broadcast %52 : vector<8x1xf32> to vector<8x128xf32>
    %63 = arith.subf %48, %62 : vector<8x128xf32>
    %cst_32 = arith.constant 9.99999974E-6 : f32
    %64 = vector.broadcast %cst_32 : f32 to vector<8x1xf32>
    %65 = arith.addf %61, %64 : vector<8x1xf32>
    %66 = math.rsqrt %65 : vector<8x1xf32>
    %67 = vector.broadcast %66 : vector<8x1xf32> to vector<8x128xf32>
    %68 = arith.mulf %63, %67 : vector<8x128xf32>
    %69 = vector.broadcast %43 : vector<1x128xf32> to vector<8x128xf32>
    %70 = arith.mulf %68, %69 : vector<8x128xf32>
    %71 = vector.broadcast %44 : vector<1x128xf32> to vector<8x128xf32>
    %72 = arith.addf %70, %71 : vector<8x128xf32>
    %cst_33 = arith.constant 5.000000e-01 : f32
    %73 = vector.broadcast %cst_33 : f32 to vector<8x128xf32>
    %74 = arith.mulf %73, %72 : vector<8x128xf32>
    %cst_34 = arith.constant 0.707106769 : f32
    %75 = vector.broadcast %cst_34 : f32 to vector<8x128xf32>
    %76 = arith.mulf %72, %75 : vector<8x128xf32>
    %77 = math.erf %76 : vector<8x128xf32>
    %cst_35 = arith.constant 1.000000e+00 : f32
    %78 = vector.broadcast %cst_35 : f32 to vector<8x128xf32>
    %79 = arith.addf %78, %77 : vector<8x128xf32>
    %80 = arith.mulf %74, %79 : vector<8x128xf32>
    %81 = arith.truncf %80 : vector<8x128xf32> to vector<8x128xbf16>
    %c0_36 = arith.constant 0 : index
    %c0_37 = arith.constant 0 : index
    %82 = vector.load %arg10[%c0_36, %c0_37] : memref<128x128xbf16, #tpu.memory_space<vmem>>, vector<128x128xbf16>
    %cst_38 = arith.constant dense<0.000000e+00> : vector<8x128xf32>
    %83 = tpu.matmul %81, %82, %cst_38 {dimension_numbers = #tpu.dot_dimension_numbers<[1], [0], [0], [1], [0, 0, 1, 1], [], []>} : vector<8x128xbf16>, vector<128x128xbf16>, vector<8x128xf32> -> vector<8x128xf32>
    %c0_39 = arith.constant 0 : index
    %c0_40 = arith.constant 0 : index
    %84 = vector.load %arg11[%c0_39, %c0_40] : memref<1x128xf32, #tpu.memory_space<vmem>>, vector<1x128xf32>
    %85 = vector.broadcast %84 : vector<1x128xf32> to vector<8x128xf32>
    %86 = arith.addf %83, %85 : vector<8x128xf32>
    %c0_41 = arith.constant 0 : index
    %c0_42 = arith.constant 0 : index
    %87 = vector.load %arg12[%c0_41, %c0_42] : memref<8x128xf32, #tpu.memory_space<vmem>>, vector<8x128xf32>
    tpu.vector_store %arg12[%c0_41, %c0_42], %86 {strides = array<i32>} : memref<8x128xf32, #tpu.memory_space<vmem>>, vector<8x128xf32>,
    return
  }
  func.func @transform_0(%arg0: i32) -> (i32, i32) {
    %c0_i32 = arith.constant 0 : i32
    %c0_i32_0 = arith.constant 0 : i32
    return %arg0, %c0_i32 : i32, i32
  }
  func.func @transform_1(%arg0: i32) -> (i32, i32) {
    %c0_i32 = arith.constant 0 : i32
    %c0_i32_0 = arith.constant 0 : i32
    %c0_i32_1 = arith.constant 0 : i32
    return %c0_i32, %c0_i32_0 : i32, i32
  }
  func.func @transform_2(%arg0: i32) -> (i32, i32) {
    %c0_i32 = arith.constant 0 : i32
    %c0_i32_0 = arith.constant 0 : i32
    %c0_i32_1 = arith.constant 0 : i32
    return %c0_i32, %c0_i32_0 : i32, i32
  }
  func.func @transform_3(%arg0: i32) -> (i32, i32) {
    %c0_i32 = arith.constant 0 : i32
    %c0_i32_0 = arith.constant 0 : i32
    %c0_i32_1 = arith.constant 0 : i32
    return %c0_i32, %c0_i32_0 : i32, i32
  }
  func.func @transform_4(%arg0: i32) -> (i32, i32) {
    %c0_i32 = arith.constant 0 : i32
    %c0_i32_0 = arith.constant 0 : i32
    %c0_i32_1 = arith.constant 0 : i32
    return %c0_i32, %c0_i32_0 : i32, i32
  }
  func.func @transform_5(%arg0: i32) -> (i32, i32) {
    %c0_i32 = arith.constant 0 : i32
    %c0_i32_0 = arith.constant 0 : i32
    %c0_i32_1 = arith.constant 0 : i32
    return %c0_i32, %c0_i32_0 : i32, i32
  }
  func.func @transform_6(%arg0: i32) -> (i32, i32) {
    %c0_i32 = arith.constant 0 : i32
    %c0_i32_0 = arith.constant 0 : i32
    %c0_i32_1 = arith.constant 0 : i32
    return %c0_i32, %c0_i32_0 : i32, i32
  }
  func.func @transform_7(%arg0: i32) -> (i32, i32) {
    %c0_i32 = arith.constant 0 : i32
    %c0_i32_0 = arith.constant 0 : i32
    %c0_i32_1 = arith.constant 0 : i32
    return %c0_i32, %c0_i32_0 : i32, i32
  }
  func.func @transform_8(%arg0: i32) -> (i32, i32) {
    %c0_i32 = arith.constant 0 : i32
    %c0_i32_0 = arith.constant 0 : i32
    %c0_i32_1 = arith.constant 0 : i32
    return %c0_i32, %c0_i32_0 : i32, i32
  }
  func.func @transform_9(%arg0: i32) -> (i32, i32) {
    %c0_i32 = arith.constant 0 : i32
    %c0_i32_0 = arith.constant 0 : i32
    %c0_i32_1 = arith.constant 0 : i32
    return %c0_i32, %c0_i32_0 : i32, i32
  }
  func.func @transform_10(%arg0: i32) -> (i32, i32) {
    %c0_i32 = arith.constant 0 : i32
    %c0_i32_0 = arith.constant 0 : i32
    %c0_i32_1 = arith.constant 0 : i32
    return %c0_i32, %c0_i32_0 : i32, i32
  }
  func.func @transform_11(%arg0: i32) -> (i32, i32) {
    %c0_i32 = arith.constant 0 : i32
    %c0_i32_0 = arith.constant 0 : i32
    return %arg0, %c0_i32 : i32, i32
  }
}

</mosaic_0001>

<llo_original>
// kernel: tpu_custom_call.1
$region0: #{tpu_custom_call.1}
  #allocation0 [shape = 'u32[]', space=smem, size = 0x4, offset = 0x4, fixed_abs, tag = 'smem constant byte address 0x4 - core index']
  #allocation1 [shape = 'u32[144,128]{1,0:T(1,128)}', space=vmem, size = 0x12000, scoped, tag = 'internal scratch']
  %s0 = inlined_call_operand.hbm [shape: f32[8,32], index: 0, kind: input, shape index: {}]
  %s1 = inlined_call_operand.hbm [shape: bf16[32,128], index: 1, kind: input, shape index: {}]
  %s2 = inlined_call_operand.vmem [shape: f32[1,128], index: 2, kind: input, shape index: {}]
  %s3 = inlined_call_operand.vmem [shape: f32[1,128], index: 3, kind: input, shape index: {}]
  %s4 = inlined_call_operand.vmem [shape: f32[1,128], index: 4, kind: input, shape index: {}]
  %s5 = inlined_call_operand.hbm [shape: bf16[128,128], index: 5, kind: input, shape index: {}]
  %s6 = inlined_call_operand.vmem [shape: f32[1,128], index: 6, kind: input, shape index: {}]
  %s7 = inlined_call_operand.vmem [shape: f32[1,128], index: 7, kind: input, shape index: {}]
  %s8 = inlined_call_operand.vmem [shape: f32[1,128], index: 8, kind: input, shape index: {}]
  %s9 = inlined_call_operand.hbm [shape: bf16[128,128], index: 9, kind: input, shape index: {}]
  %s10 = inlined_call_operand.vmem [shape: f32[1,128], index: 10, kind: input, shape index: {}]
  %s11 = inlined_call_operand.hbm [shape: f32[8,128], index: 11, kind: output, shape index: {}]
  %s12 = sld [smem:[#allocation0]]
  $region70: #{tpu_custom_call.1} parent=0
    _
  %s14 = ssub.s32 1, %s12
  %s15 = scalar_select 0, %s14, %s12
  $region1: #{tpu_custom_call.1} parent=0
    #allocation2 [shape = 'u8[4096]{0}', space=vmem, size = 0x1000, scoped, tag = 'input window, operand 0, single buffered']
    #allocation3 [shape = 's32[1]{0}', space=sflag, size = 0x4, scoped, tag = 'scoped memory for tpu_custom_call.1']
    #allocation4 [shape = 's32[1]{0}', space=sflag, size = 0x4, scoped, tag = 'scoped memory for tpu_custom_call.1']
    #allocation5 [shape = 'u8[8192]{0}', space=vmem, size = 0x2000, scoped, tag = 'input window, operand 1, single buffered']
    #allocation6 [shape = 's32[1]{0}', space=sflag, size = 0x4, scoped, tag = 'scoped memory for tpu_custom_call.1']
    #allocation7 [shape = 'u8[32768]{0}', space=vmem, size = 0x8000, scoped, tag = 'input window, operand 5, single buffered']
    #allocation8 [shape = 'u8[32768]{0}', space=vmem, size = 0x8000, scoped, tag = 'input window, operand 9, single buffered']
    #allocation9 [shape = 's32[1]{0}', space=sflag, size = 0x4, scoped, tag = 'scoped memory for tpu_custom_call.1']
    #allocation10 [shape = 'u8[4096]{0}', space=vmem, size = 0x1000, scoped, tag = 'output window, operand 0, single buffered']
    %16 = vsyncpa [#allocation3], 0
    %17 = vsyncpa [#allocation6], 0
    %18 = vsyncpa [#allocation9], 0
    %19 = vsyncpa [#allocation4], 0
    // Predicated region
    $region2: #{tpu_custom_call.1} parent=1 // pred_check
      _
    $region3: #{tpu_custom_call.1} parent=1 // pred_check_branch
      %21 = sbr.rel (0) target = $region5
    $region4: #{tpu_custom_call.1} parent=1 // pred_region
      %s23 = ssub.s32 128, 128
      %24 = vsyncadd [#allocation3], %s23
      %s26 = sshll.u32 [#allocation2], 4
      %s27 = int_to_ptr.vmem [resolvable:$true] %s26
      %29 = dma.hbm_to_vmem [thread:$0]  %s0, 128, %s27, [#allocation3]
    $region5: #{tpu_custom_call.1} parent=1 // pred_fallthru
      _
    // Predicated region
    $region6: #{tpu_custom_call.1} parent=1 // pred_check
      _
    $region7: #{tpu_custom_call.1} parent=1 // pred_check_branch
      %31 = sbr.rel (0) target = $region9
    $region8: #{tpu_custom_call.1} parent=1 // pred_region
      %s33 = ssub.s32 256, 256
      %34 = vsyncadd [#allocation6], %s33
      %s35 = sshll.u32 [#allocation5], 4
      %s36 = int_to_ptr.vmem [resolvable:$true] %s35
      %41 = dma.hbm_to_vmem [thread:$0]  %s1, 256, %s36, [#allocation6], 64, 64, 4
    $region9: #{tpu_custom_call.1} parent=1 // pred_fallthru
      _
    // Predicated region
    $region10: #{tpu_custom_call.1} parent=1 // pred_check
      _
    $region11: #{tpu_custom_call.1} parent=1 // pred_check_branch
      %43 = sbr.rel (0) target = $region13
    $region12: #{tpu_custom_call.1} parent=1 // pred_region
      _
    $region13: #{tpu_custom_call.1} parent=1 // pred_fallthru
      _
    // Predicated region
    $region14: #{tpu_custom_call.1} parent=1 // pred_check
      _
    $region15: #{tpu_custom_call.1} parent=1 // pred_check_branch
      %45 = sbr.rel (0) target = $region17
    $region16: #{tpu_custom_call.1} parent=1 // pred_region
      _
    $region17: #{tpu_custom_call.1} parent=1 // pred_fallthru
      _
    // Predicated region
    $region18: #{tpu_custom_call.1} parent=1 // pred_check
      _
    $region19: #{tpu_custom_call.1} parent=1 // pred_check_branch
      %47 = sbr.rel (0) target = $region21
    $region20: #{tpu_custom_call.1} parent=1 // pred_region
      _
    $region21: #{tpu_custom_call.1} parent=1 // pred_fallthru
      _
    // Predicated region
    $region22: #{tpu_custom_call.1} parent=1 // pred_check
      _
    $region23: #{tpu_custom_call.1} parent=1 // pred_check_branch
      %49 = sbr.rel (0) target = $region25
    $region24: #{tpu_custom_call.1} parent=1 // pred_region
      %s51 = ssub.s32 1024, 1024
      %52 = vsyncadd [#allocation6], %s51
      %s53 = sshll.u32 [#allocation7], 4
      %s54 = int_to_ptr.vmem [resolvable:$true] %s53
      %59 = dma.hbm_to_vmem [thread:$0]  %s5, 1024, %s54, [#allocation6], 64, 64, 4
    $region25: #{tpu_custom_call.1} parent=1 // pred_fallthru
      _
    // Predicated region
    $region26: #{tpu_custom_call.1} parent=1 // pred_check
      _
    $region27: #{tpu_custom_call.1} parent=1 // pred_check_branch
      %61 = sbr.rel (0) target = $region29
    $region28: #{tpu_custom_call.1} parent=1 // pred_region
      _
    $region29: #{tpu_custom_call.1} parent=1 // pred_fallthru
      _
    // Predicated region
    $region30: #{tpu_custom_call.1} parent=1 // pred_check
      _
    $region31: #{tpu_custom_call.1} parent=1 // pred_check_branch
      %63 = sbr.rel (0) target = $region33
    $region32: #{tpu_custom_call.1} parent=1 // pred_region
      _
    $region33: #{tpu_custom_call.1} parent=1 // pred_fallthru
      _
    // Predicated region
    $region34: #{tpu_custom_call.1} parent=1 // pred_check
      _
    $region35: #{tpu_custom_call.1} parent=1 // pred_check_branch
      %65 = sbr.rel (0) target = $region37
    $region36: #{tpu_custom_call.1} parent=1 // pred_region
      _
    $region37: #{tpu_custom_call.1} parent=1 // pred_fallthru
      _
    // Predicated region
    $region38: #{tpu_custom_call.1} parent=1 // pred_check
      _
    $region39: #{tpu_custom_call.1} parent=1 // pred_check_branch
      %67 = sbr.rel (0) target = $region41
    $region40: #{tpu_custom_call.1} parent=1 // pred_region
      %s69 = ssub.s32 1024, 1024
      %70 = vsyncadd [#allocation9], %s69
      %s71 = sshll.u32 [#allocation8], 4
      %s72 = int_to_ptr.vmem [resolvable:$true] %s71
      %77 = dma.hbm_to_vmem [thread:$0]  %s9, 1024, %s72, [#allocation9], 64, 64, 4
    $region41: #{tpu_custom_call.1} parent=1 // pred_fallthru
      _
    // Predicated region
    $region42: #{tpu_custom_call.1} parent=1 // pred_check
      _
    $region43: #{tpu_custom_call.1} parent=1 // pred_check_branch
      %79 = sbr.rel (0) target = $region45
    $region44: #{tpu_custom_call.1} parent=1 // pred_region
      _
    $region45: #{tpu_custom_call.1} parent=1 // pred_fallthru
      _
    // Predicated region
    $region46: #{tpu_custom_call.1} parent=1 // pred_check
      _
    $region47: #{tpu_custom_call.1} parent=1 // pred_check_branch
      %81 = sbr.rel (0) target = $region49
    $region48: #{tpu_custom_call.1} parent=1 // pred_region
      %82 = dma.done [#allocation3], 128
    $region49: #{tpu_custom_call.1} parent=1 // pred_fallthru
      _
    // Predicated region
    $region50: #{tpu_custom_call.1} parent=1 // pred_check
      _
    $region51: #{tpu_custom_call.1} parent=1 // pred_check_branch
      %84 = sbr.rel (0) target = $region53
    $region52: #{tpu_custom_call.1} parent=1 // pred_region
      %85 = dma.done [#allocation6], 256
    $region53: #{tpu_custom_call.1} parent=1 // pred_fallthru
      _
    // Predicated region
    $region54: #{tpu_custom_call.1} parent=1 // pred_check
      _
    $region55: #{tpu_custom_call.1} parent=1 // pred_check_branch
      %87 = sbr.rel (0) target = $region57
    $region56: #{tpu_custom_call.1} parent=1 // pred_region
      %88 = dma.done [#allocation6], 1024
    $region57: #{tpu_custom_call.1} parent=1 // pred_fallthru
      _
    // Predicated region
    $region58: #{tpu_custom_call.1} parent=1 // pred_check
      _
    $region59: #{tpu_custom_call.1} parent=1 // pred_check_branch
      %90 = sbr.rel (0) target = $region61
    $region60: #{tpu_custom_call.1} parent=1 // pred_region
      %91 = dma.done [#allocation9], 1024
    $region61: #{tpu_custom_call.1} parent=1 // pred_fallthru
      _
    %v93 = vld [vmem:[#allocation2] sm:$0xff]
    %v94 = vld [vmem:[#allocation5] sm:$0xf]
    %v95 = vld [vmem:[#allocation5 + $0x4] sm:$0xf]
    %v96 = vld [vmem:[#allocation5 + $0x8] sm:$0xf]
    %v97 = vld [vmem:[#allocation5 + $0xc] sm:$0xf]
    %v98 = vld [vmem:[%s2] sm:$0x1]
    %v99 = vld [vmem:[%s3] sm:$0x1]
    %v100 = vld [vmem:[%s4] sm:$0x1]
    %v101 = vpack.c.bf16 %v93, %v93
    %v103 = vlaneseq
    %v104 = vshrl.u32 %v103, 7
    %v105 = vsub.s32 0, %v104
    %v106 = vrot.slane %v98, %v105
    %v112 = vunpack.c.l.b16 %v94
    %v113 = vunpack.c.l.b16 %v95
    %v114 = vunpack.c.l.b16 %v96
    %v115 = vunpack.c.l.b16 %v97
    %v116 = vpack.c.b16 %v113, %v112
    %v117 = vpack.c.b16 %v115, %v114
    %vm120 = vcmask 261120
    %v122 = vsel %vm120, %v101, 0
    %124 = vmatprep.subr.bf16.mxu0 0
    %125 = vmatpush1.bf16.msra.mxu0 0
    %126 = vmatprep.subr.bf16.mxu0 0
    %127 = vmatpush1.bf16.msra.mxu0 0
    %128 = vmatprep.subr.bf16.mxu0 0
    %129 = vmatpush1.bf16.msra.mxu0 0
    %130 = vmatprep.subr.bf16.mxu0 0
    %131 = vmatpush1.bf16.msra.mxu0 0
    %132 = vmatprep.subr.bf16.mxu0 0
    %133 = vmatpush1.bf16.msra.mxu0 0
    %134 = vmatprep.subr.bf16.mxu0 0
    %135 = vmatpush1.bf16.msra.mxu0 0
    %136 = vmatprep.subr.bf16.mxu0 0
    %137 = vmatpush1.bf16.msra.mxu0 %v117
    %138 = vmatprep.subr.bf16.mxu0 0
    %139 = vmatpush1.bf16.msra.mxu0 %v116
    %140 = vmatprep.subr.bf16.mxu0 0
    %141 = vmatpush2.bf16.msra.mxu0 0
    %142 = vmatprep.subr.bf16.mxu0 0
    %143 = vmatpush2.bf16.msra.mxu0 0
    %144 = vmatprep.subr.bf16.mxu0 0
    %145 = vmatpush2.bf16.msra.mxu0 0
    %146 = vmatprep.subr.bf16.mxu0 0
    %147 = vmatpush2.bf16.msra.mxu0 0
    %148 = vmatprep.subr.bf16.mxu0 0
    %149 = vmatpush2.bf16.msra.mxu0 0
    %150 = vmatprep.subr.bf16.mxu0 0
    %151 = vmatpush2.bf16.msra.mxu0 0
    %152 = vmatprep.subr.bf16.mxu0 0
    %153 = vmatpush2.bf16.msra.mxu0 0
    %154 = vmatprep.subr.bf16.mxu0 0
    %155 = vmatpush2.bf16.msra.mxu0 0
    %156 = vmatprep.mubr.bf16.mxu0 0
    %157 = vmatmul.mubr.bf16.gmra.mxu0 %v122
    %v158 = vpop.f32.mrf.mxu0
    %v159 = vadd.f32 %v106, %v158
    %v160 = vpop.f32.mrf.mxu0
    %v161 = vpop.f32.mrf.mxu0
    %v162 = vpop.f32.mrf.mxu0
    %163 = vdwg.mxu0
    %164 = vadd.xlane.f32.xlu0 %v159
    %v165 = vpop.xlane.xlu0 %164
    %v166 = vmul.f32 %v165, 0.015625
    %v167 = vmul.f32 %v159, %v159
    %168 = vadd.xlane.f32.xlu0 %v167
    %v169 = vpop.xlane.xlu0 %168
    %v170 = vmul.f32 %v169, 0.015625
    %v171 = vmul.f32 %v166, %v166
    %v172 = vsub.f32 %v170, %v171
    %v173 = vmax.f32 %v172, 0.0
    %v174 = vsub.f32 %v159, %v166
    %v175 = vadd.f32 %v173, 1e-05
    %v176 = vrsqrt.pop %v175
    %v177 = vmul.f32 %v174, %v176
    %v179 = vlaneseq
    %v180 = vshrl.u32 %v179, 7
    %v181 = vsub.s32 0, %v180
    %v182 = vrot.slane %v99, %v181
    %v184 = vmul.f32 %v177, %v182
    %v186 = vlaneseq
    %v187 = vshrl.u32 %v186, 7
    %v188 = vsub.s32 0, %v187
    %v189 = vrot.slane %v100, %v188
    %v191 = vadd.f32 %v184, %v189
    %v192 = vmul.f32 %v191, 0.5
    %v193 = vmul.f32 %v191, 0.70710677
    %v194 = verf.f32.pop %v193
    %v195 = vadd.f32 %v194, 1.0
    %v196 = vmul.f32 %v192, %v195
    %v197 = vld [vmem:[#allocation7] sm:$0xf]
    %v198 = vld [vmem:[#allocation7 + $0x4] sm:$0xf]
    %v199 = vld [vmem:[#allocation7 + $0x8] sm:$0xf]
    %v200 = vld [vmem:[#allocation7 + $0xc] sm:$0xf]
    %v201 = vld [vmem:[#allocation7 + $0x10] sm:$0xf]
    %v202 = vld [vmem:[#allocation7 + $0x14] sm:$0xf]
    %v203 = vld [vmem:[#allocation7 + $0x18] sm:$0xf]
    %v204 = vld [vmem:[#allocation7 + $0x1c] sm:$0xf]
    %v205 = vld [vmem:[#allocation7 + $0x20] sm:$0xf]
    %v206 = vld [vmem:[#allocation7 + $0x24] sm:$0xf]
    %v207 = vld [vmem:[#allocation7 + $0x28] sm:$0xf]
    %v208 = vld [vmem:[#allocation7 + $0x2c] sm:$0xf]
    %v209 = vld [vmem:[#allocation7 + $0x30] sm:$0xf]
    %v210 = vld [vmem:[#allocation7 + $0x34] sm:$0xf]
    %v211 = vld [vmem:[#allocation7 + $0x38] sm:$0xf]
    %v212 = vld [vmem:[#allocation7 + $0x3c] sm:$0xf]
    %v213 = vld [vmem:[%s6] sm:$0x1]
    %v214 = vld [vmem:[%s7] sm:$0x1]
    %v215 = vld [vmem:[%s8] sm:$0x1]
    %v216 = vpack.c.bf16 %v196, %v196
    %v218 = vlaneseq
    %v219 = vshrl.u32 %v218, 7
    %v220 = vsub.s32 0, %v219
    %v221 = vrot.slane %v213, %v220
    %v239 = vunpack.c.l.b16 %v197
    %v240 = vunpack.c.l.b16 %v198
    %v241 = vunpack.c.l.b16 %v199
    %v242 = vunpack.c.l.b16 %v200
    %v243 = vunpack.c.l.b16 %v201
    %v244 = vunpack.c.l.b16 %v202
    %v245 = vunpack.c.l.b16 %v203
    %v246 = vunpack.c.l.b16 %v204
    %v247 = vunpack.c.l.b16 %v205
    %v248 = vunpack.c.l.b16 %v206
    %v249 = vunpack.c.l.b16 %v207
    %v250 = vunpack.c.l.b16 %v208
    %v251 = vunpack.c.l.b16 %v209
    %v252 = vunpack.c.l.b16 %v210
    %v253 = vunpack.c.l.b16 %v211
    %v254 = vunpack.c.l.b16 %v212
    %v255 = vpack.c.b16 %v240, %v239
    %v256 = vpack.c.b16 %v242, %v241
    %v257 = vpack.c.b16 %v244, %v243
    %v258 = vpack.c.b16 %v246, %v245
    %v259 = vpack.c.b16 %v248, %v247
    %v260 = vpack.c.b16 %v250, %v249
    %v261 = vpack.c.b16 %v252, %v251
    %v262 = vpack.c.b16 %v254, %v253
    %271 = vmatprep.subr.bf16.mxu0 0
    %272 = vmatpush1.bf16.msra.mxu0 %v262
    %273 = vmatprep.subr.bf16.mxu0 0
    %274 = vmatpush1.bf16.msra.mxu0 %v261
    %275 = vmatprep.subr.bf16.mxu0 0
    %276 = vmatpush1.bf16.msra.mxu0 %v260
    %277 = vmatprep.subr.bf16.mxu0 0
    %278 = vmatpush1.bf16.msra.mxu0 %v259
    %279 = vmatprep.subr.bf16.mxu0 0
    %280 = vmatpush1.bf16.msra.mxu0 %v258
    %281 = vmatprep.subr.bf16.mxu0 0
    %282 = vmatpush1.bf16.msra.mxu0 %v257
    %283 = vmatprep.subr.bf16.mxu0 0
    %284 = vmatpush1.bf16.msra.mxu0 %v256
    %285 = vmatprep.subr.bf16.mxu0 0
    %286 = vmatpush1.bf16.msra.mxu0 %v255
    %287 = vmatprep.subr.bf16.mxu0 0
    %288 = vmatpush2.bf16.msra.mxu0 0
    %289 = vmatprep.subr.bf16.mxu0 0
    %290 = vmatpush2.bf16.msra.mxu0 0
    %291 = vmatprep.subr.bf16.mxu0 0
    %292 = vmatpush2.bf16.msra.mxu0 0
    %293 = vmatprep.subr.bf16.mxu0 0
    %294 = vmatpush2.bf16.msra.mxu0 0
    %295 = vmatprep.subr.bf16.mxu0 0
    %296 = vmatpush2.bf16.msra.mxu0 0
    %297 = vmatprep.subr.bf16.mxu0 0
    %298 = vmatpush2.bf16.msra.mxu0 0
    %299 = vmatprep.subr.bf16.mxu0 0
    %300 = vmatpush2.bf16.msra.mxu0 0
    %301 = vmatprep.subr.bf16.mxu0 0
    %302 = vmatpush2.bf16.msra.mxu0 0
    %303 = vmatprep.mubr.bf16.mxu0 0
    %304 = vmatmul.mubr.bf16.gmra.mxu0 %v216
    %v305 = vpop.f32.mrf.mxu0
    %v306 = vadd.f32 %v221, %v305
    %v307 = vpop.f32.mrf.mxu0
    %v308 = vpop.f32.mrf.mxu0
    %v309 = vpop.f32.mrf.mxu0
    %310 = vdwg.mxu0
    %311 = vadd.xlane.f32.xlu0 %v306
    %v312 = vpop.xlane.xlu0 %311
    %v313 = vmul.f32 %v312, 0.03125
    %v314 = vmul.f32 %v306, %v306
    %315 = vadd.xlane.f32.xlu0 %v314
    %v316 = vpop.xlane.xlu0 %315
    %v317 = vmul.f32 %v316, 0.03125
    %v318 = vmul.f32 %v313, %v313
    %v319 = vsub.f32 %v317, %v318
    %v320 = vmax.f32 %v319, 0.0
    %v321 = vsub.f32 %v306, %v313
    %v322 = vadd.f32 %v320, 1e-05
    %v323 = vrsqrt.pop %v322
    %v324 = vmul.f32 %v321, %v323
    %v326 = vlaneseq
    %v327 = vshrl.u32 %v326, 7
    %v328 = vsub.s32 0, %v327
    %v329 = vrot.slane %v214, %v328
    %v331 = vmul.f32 %v324, %v329
    %v333 = vlaneseq
    %v334 = vshrl.u32 %v333, 7
    %v335 = vsub.s32 0, %v334
    %v336 = vrot.slane %v215, %v335
    %v338 = vadd.f32 %v331, %v336
    %v339 = vmul.f32 %v338, 0.5
    %v340 = vmul.f32 %v338, 0.70710677
    %v341 = verf.f32.pop %v340
    %v342 = vadd.f32 %v341, 1.0
    %v343 = vmul.f32 %v339, %v342
    %v344 = vpack.c.bf16 %v343, %v343
    %v345 = vld [vmem:[#allocation8] sm:$0xf]
    %v346 = vld [vmem:[#allocation8 + $0x4] sm:$0xf]
    %v347 = vld [vmem:[#allocation8 + $0x8] sm:$0xf]
    %v348 = vld [vmem:[#allocation8 + $0xc] sm:$0xf]
    %v349 = vld [vmem:[#allocation8 + $0x10] sm:$0xf]
    %v350 = vld [vmem:[#allocation8 + $0x14] sm:$0xf]
    %v351 = vld [vmem:[#allocation8 + $0x18] sm:$0xf]
    %v352 = vld [vmem:[#allocation8 + $0x1c] sm:$0xf]
    %v353 = vld [vmem:[#allocation8 + $0x20] sm:$0xf]
    %v354 = vld [vmem:[#allocation8 + $0x24] sm:$0xf]
    %v355 = vld [vmem:[#allocation8 + $0x28] sm:$0xf]
    %v356 = vld [vmem:[#allocation8 + $0x2c] sm:$0xf]
    %v357 = vld [vmem:[#allocation8 + $0x30] sm:$0xf]
    %v358 = vld [vmem:[#allocation8 + $0x34] sm:$0xf]
    %v359 = vld [vmem:[#allocation8 + $0x38] sm:$0xf]
    %v360 = vld [vmem:[#allocation8 + $0x3c] sm:$0xf]
    %v361 = vld [vmem:[%s10] sm:$0x1]
    %v363 = vlaneseq
    %v364 = vshrl.u32 %v363, 7
    %v365 = vsub.s32 0, %v364
    %v366 = vrot.slane %v361, %v365
    %v384 = vunpack.c.l.b16 %v345
    %v385 = vunpack.c.l.b16 %v346
    %v386 = vunpack.c.l.b16 %v347
    %v387 = vunpack.c.l.b16 %v348
    %v388 = vunpack.c.l.b16 %v349
    %v389 = vunpack.c.l.b16 %v350
    %v390 = vunpack.c.l.b16 %v351
    %v391 = vunpack.c.l.b16 %v352
    %v392 = vunpack.c.l.b16 %v353
    %v393 = vunpack.c.l.b16 %v354
    %v394 = vunpack.c.l.b16 %v355
    %v395 = vunpack.c.l.b16 %v356
    %v396 = vunpack.c.l.b16 %v357
    %v397 = vunpack.c.l.b16 %v358
    %v398 = vunpack.c.l.b16 %v359
    %v399 = vunpack.c.l.b16 %v360
    %v400 = vpack.c.b16 %v385, %v384
    %v401 = vpack.c.b16 %v387, %v386
    %v402 = vpack.c.b16 %v389, %v388
    %v403 = vpack.c.b16 %v391, %v390
    %v404 = vpack.c.b16 %v393, %v392
    %v405 = vpack.c.b16 %v395, %v394
    %v406 = vpack.c.b16 %v397, %v396
    %v407 = vpack.c.b16 %v399, %v398
    %416 = vmatprep.subr.bf16.mxu0 0
    %417 = vmatpush1.bf16.msra.mxu0 %v407
    %418 = vmatprep.subr.bf16.mxu0 0
    %419 = vmatpush1.bf16.msra.mxu0 %v406
    %420 = vmatprep.subr.bf16.mxu0 0
    %421 = vmatpush1.bf16.msra.mxu0 %v405
    %422 = vmatprep.subr.bf16.mxu0 0
    %423 = vmatpush1.bf16.msra.mxu0 %v404
    %424 = vmatprep.subr.bf16.mxu0 0
    %425 = vmatpush1.bf16.msra.mxu0 %v403
    %426 = vmatprep.subr.bf16.mxu0 0
    %427 = vmatpush1.bf16.msra.mxu0 %v402
    %428 = vmatprep.subr.bf16.mxu0 0
    %429 = vmatpush1.bf16.msra.mxu0 %v401
    %430 = vmatprep.subr.bf16.mxu0 0
    %431 = vmatpush1.bf16.msra.mxu0 %v400
    %432 = vmatprep.subr.bf16.mxu0 0
    %433 = vmatpush2.bf16.msra.mxu0 0
    %434 = vmatprep.subr.bf16.mxu0 0
    %435 = vmatpush2.bf16.msra.mxu0 0
    %436 = vmatprep.subr.bf16.mxu0 0
    %437 = vmatpush2.bf16.msra.mxu0 0
    %438 = vmatprep.subr.bf16.mxu0 0
    %439 = vmatpush2.bf16.msra.mxu0 0
    %440 = vmatprep.subr.bf16.mxu0 0
    %441 = vmatpush2.bf16.msra.mxu0 0
    %442 = vmatprep.subr.bf16.mxu0 0
    %443 = vmatpush2.bf16.msra.mxu0 0
    %444 = vmatprep.subr.bf16.mxu0 0
    %445 = vmatpush2.bf16.msra.mxu0 0
    %446 = vmatprep.subr.bf16.mxu0 0
    %447 = vmatpush2.bf16.msra.mxu0 0
    %448 = vmatprep.mubr.bf16.mxu0 0
    %449 = vmatmul.mubr.bf16.gmra.mxu0 %v344
    %v450 = vpop.f32.mrf.mxu0
    %v451 = vadd.f32 %v366, %v450
    %v452 = vpop.f32.mrf.mxu0
    %v453 = vpop.f32.mrf.mxu0
    %v454 = vpop.f32.mrf.mxu0
    %455 = vdwg.mxu0
    %456 = vst [vmem:[#allocation10] sm:$0xff] %v451
    // Predicated region
    $region62: #{tpu_custom_call.1} parent=1 // pred_check
      _
    $region63: #{tpu_custom_call.1} parent=1 // pred_check_branch
      %458 = sbr.rel (0) target = $region65
    $region64: #{tpu_custom_call.1} parent=1 // pred_region
      %s460 = ssub.s32 128, 128
      %461 = vsyncadd [#allocation4], %s460
      %s463 = sshll.u32 [#allocation10], 4
      %s464 = int_to_ptr.vmem [resolvable:$true] %s463
      %466 = dma.vmem_to_hbm [thread:$0]  %s464, 128, %s11, [#allocation4]
    $region65: #{tpu_custom_call.1} parent=1 // pred_fallthru
      _
    // Predicated region
    $region66: #{tpu_custom_call.1} parent=1 // pred_check
      _
    $region67: #{tpu_custom_call.1} parent=1 // pred_check_branch
      %468 = sbr.rel (0) target = $region69
    $region68: #{tpu_custom_call.1} parent=1 // pred_region
      %469 = dma.done [#allocation4], 128
    $region69: #{tpu_custom_call.1} parent=1 // pred_fallthru
      _
    %470 = vsyncpa [#allocation3], 1
    %471 = vsyncpa [#allocation6], 1
    %472 = vsyncpa [#allocation9], 1
    %473 = vsyncpa [#allocation4], 1

// kernel: tpu_custom_call.1
$region0: #{tpu_custom_call.1}
  #allocation0 [shape = 'u32[]', space=smem, size = 0x4, offset = 0x4, fixed_abs, tag = 'smem constant byte address 0x4 - core index']
  #allocation1 [shape = 'u32[144,128]{1,0:T(1,128)}', space=vmem, size = 0x12000, scoped, tag = 'internal scratch']
  %s0 = inlined_call_operand.hbm [shape: f32[8,32], index: 0, kind: input, shape index: {}]
  %s1 = inlined_call_operand.hbm [shape: bf16[32,128], index: 1, kind: input, shape index: {}]
  %s2 = inlined_call_operand.vmem [shape: f32[1,128], index: 2, kind: input, shape index: {}]
  %s3 = inlined_call_operand.vmem [shape: f32[1,128], index: 3, kind: input, shape index: {}]
  %s4 = inlined_call_operand.vmem [shape: f32[1,128], index: 4, kind: input, shape index: {}]
  %s5 = inlined_call_operand.hbm [shape: bf16[128,128], index: 5, kind: input, shape index: {}]
  %s6 = inlined_call_operand.vmem [shape: f32[1,128], index: 6, kind: input, shape index: {}]
  %s7 = inlined_call_operand.vmem [shape: f32[1,128], index: 7, kind: input, shape index: {}]
  %s8 = inlined_call_operand.vmem [shape: f32[1,128], index: 8, kind: input, shape index: {}]
  %s9 = inlined_call_operand.hbm [shape: bf16[128,128], index: 9, kind: input, shape index: {}]
  %s10 = inlined_call_operand.vmem [shape: f32[1,128], index: 10, kind: input, shape index: {}]
  %s11 = inlined_call_operand.hbm [shape: f32[8,128], index: 11, kind: output, shape index: {}]
  %s12 = sld [smem:[#allocation0]]
  $region70: #{tpu_custom_call.1} parent=0
    _
  %s14 = ssub.s32 1, %s12
  %s15 = scalar_select 0, %s14, %s12
  $region1: #{tpu_custom_call.1} parent=0
    #allocation2 [shape = 'u8[4096]{0}', space=vmem, size = 0x1000, scoped, tag = 'input window, operand 0, single buffered']
    #allocation3 [shape = 's32[1]{0}', space=sflag, size = 0x4, scoped, tag = 'scoped memory for tpu_custom_call.1']
    #allocation4 [shape = 's32[1]{0}', space=sflag, size = 0x4, scoped, tag = 'scoped memory for tpu_custom_call.1']
    #allocation5 [shape = 'u8[8192]{0}', space=vmem, size = 0x2000, scoped, tag = 'input window, operand 1, single buffered']
    #allocation6 [shape = 's32[1]{0}', space=sflag, size = 0x4, scoped, tag = 'scoped memory for tpu_custom_call.1']
    #allocation7 [shape = 'u8[32768]{0}', space=vmem, size = 0x8000, scoped, tag = 'input window, operand 5, single buffered']
    #allocation8 [shape = 'u8[32768]{0}', space=vmem, size = 0x8000, scoped, tag = 'input window, operand 9, single buffered']
    #allocation9 [shape = 's32[1]{0}', space=sflag, size = 0x4, scoped, tag = 'scoped memory for tpu_custom_call.1']
    #allocation10 [shape = 'u8[4096]{0}', space=vmem, size = 0x1000, scoped, tag = 'output window, operand 0, single buffered']
    %16 = vsyncpa [#allocation3], 0
    %17 = vsyncpa [#allocation6], 0
    %18 = vsyncpa [#allocation9], 0
    %19 = vsyncpa [#allocation4], 0
    // Predicated region
    $region2: #{tpu_custom_call.1} parent=1 // pred_check
      _
    $region3: #{tpu_custom_call.1} parent=1 // pred_check_branch
      %21 = sbr.rel (0) target = $region5
    $region4: #{tpu_custom_call.1} parent=1 // pred_region
      %s23 = ssub.s32 128, 128
      %24 = vsyncadd [#allocation3], %s23
      %s26 = sshll.u32 [#allocation2], 4
      %s27 = int_to_ptr.vmem [resolvable:$true] %s26
      %29 = dma.hbm_to_vmem [thread:$0]  %s0, 128, %s27, [#allocation3]
    $region5: #{tpu_custom_call.1} parent=1 // pred_fallthru
      _
    // Predicated region
    $region6: #{tpu_custom_call.1} parent=1 // pred_check
      _
    $region7: #{tpu_custom_call.1} parent=1 // pred_check_branch
      %31 = sbr.rel (0) target = $region9
    $region8: #{tpu_custom_call.1} parent=1 // pred_region
      %s33 = ssub.s32 256, 256
      %34 = vsyncadd [#allocation6], %s33
      %s35 = sshll.u32 [#allocation5], 4
      %s36 = int_to_ptr.vmem [resolvable:$true] %s35
      %41 = dma.hbm_to_vmem [thread:$0]  %s1, 256, %s36, [#allocation6], 64, 64, 4
    $region9: #{tpu_custom_call.1} parent=1 // pred_fallthru
      _
    // Predicated region
    $region10: #{tpu_custom_call.1} parent=1 // pred_check
      _
    $region11: #{tpu_custom_call.1} parent=1 // pred_check_branch
      %43 = sbr.rel (0) target = $region13
    $region12: #{tpu_custom_call.1} parent=1 // pred_region
      _
    $region13: #{tpu_custom_call.1} parent=1 // pred_fallthru
      _
    // Predicated region
    $region14: #{tpu_custom_call.1} parent=1 // pred_check
      _
    $region15: #{tpu_custom_call.1} parent=1 // pred_check_branch
      %45 = sbr.rel (0) target = $region17
    $region16: #{tpu_custom_call.1} parent=1 // pred_region
      _
    $region17: #{tpu_custom_call.1} parent=1 // pred_fallthru
      _
    // Predicated region
    $region18: #{tpu_custom_call.1} parent=1 // pred_check
      _
    $region19: #{tpu_custom_call.1} parent=1 // pred_check_branch
      %47 = sbr.rel (0) target = $region21
    $region20: #{tpu_custom_call.1} parent=1 // pred_region
      _
    $region21: #{tpu_custom_call.1} parent=1 // pred_fallthru
      _
    // Predicated region
    $region22: #{tpu_custom_call.1} parent=1 // pred_check
      _
    $region23: #{tpu_custom_call.1} parent=1 // pred_check_branch
      %49 = sbr.rel (0) target = $region25
    $region24: #{tpu_custom_call.1} parent=1 // pred_region
      %s51 = ssub.s32 1024, 1024
      %52 = vsyncadd [#allocation6], %s51
      %s53 = sshll.u32 [#allocation7], 4
      %s54 = int_to_ptr.vmem [resolvable:$true] %s53
      %59 = dma.hbm_to_vmem [thread:$0]  %s5, 1024, %s54, [#allocation6], 64, 64, 4
    $region25: #{tpu_custom_call.1} parent=1 // pred_fallthru
      _
    // Predicated region
    $region26: #{tpu_custom_call.1} parent=1 // pred_check
      _
    $region27: #{tpu_custom_call.1} parent=1 // pred_check_branch
      %61 = sbr.rel (0) target = $region29
    $region28: #{tpu_custom_call.1} parent=1 // pred_region
      _
    $region29: #{tpu_custom_call.1} parent=1 // pred_fallthru
      _
    // Predicated region
    $region30: #{tpu_custom_call.1} parent=1 // pred_check
      _
    $region31: #{tpu_custom_call.1} parent=1 // pred_check_branch
      %63 = sbr.rel (0) target = $region33
    $region32: #{tpu_custom_call.1} parent=1 // pred_region
      _
    $region33: #{tpu_custom_call.1} parent=1 // pred_fallthru
      _
    // Predicated region
    $region34: #{tpu_custom_call.1} parent=1 // pred_check
      _
    $region35: #{tpu_custom_call.1} parent=1 // pred_check_branch
      %65 = sbr.rel (0) target = $region37
    $region36: #{tpu_custom_call.1} parent=1 // pred_region
      _
    $region37: #{tpu_custom_call.1} parent=1 // pred_fallthru
      _
    // Predicated region
    $region38: #{tpu_custom_call.1} parent=1 // pred_check
      _
    $region39: #{tpu_custom_call.1} parent=1 // pred_check_branch
      %67 = sbr.rel (0) target = $region41
    $region40: #{tpu_custom_call.1} parent=1 // pred_region
      %s69 = ssub.s32 1024, 1024
      %70 = vsyncadd [#allocation9], %s69
      %s71 = sshll.u32 [#allocation8], 4
      %s72 = int_to_ptr.vmem [resolvable:$true] %s71
      %77 = dma.hbm_to_vmem [thread:$0]  %s9, 1024, %s72, [#allocation9], 64, 64, 4
    $region41: #{tpu_custom_call.1} parent=1 // pred_fallthru
      _
    // Predicated region
    $region42: #{tpu_custom_call.1} parent=1 // pred_check
      _
    $region43: #{tpu_custom_call.1} parent=1 // pred_check_branch
      %79 = sbr.rel (0) target = $region45
    $region44: #{tpu_custom_call.1} parent=1 // pred_region
      _
    $region45: #{tpu_custom_call.1} parent=1 // pred_fallthru
      _
    // Predicated region
    $region46: #{tpu_custom_call.1} parent=1 // pred_check
      _
    $region47: #{tpu_custom_call.1} parent=1 // pred_check_branch
      %81 = sbr.rel (0) target = $region49
    $region48: #{tpu_custom_call.1} parent=1 // pred_region
      %82 = dma.done [#allocation3], 128
    $region49: #{tpu_custom_call.1} parent=1 // pred_fallthru
      _
    // Predicated region
    $region50: #{tpu_custom_call.1} parent=1 // pred_check
      _
    $region51: #{tpu_custom_call.1} parent=1 // pred_check_branch
      %84 = sbr.rel (0) target = $region53
    $region52: #{tpu_custom_call.1} parent=1 // pred_region
      %85 = dma.done [#allocation6], 256
    $region53: #{tpu_custom_call.1} parent=1 // pred_fallthru
      _
    // Predicated region
    $region54: #{tpu_custom_call.1} parent=1 // pred_check
      _
    $region55: #{tpu_custom_call.1} parent=1 // pred_check_branch
      %87 = sbr.rel (0) target = $region57
    $region56: #{tpu_custom_call.1} parent=1 // pred_region
      %88 = dma.done [#allocation6], 1024
    $region57: #{tpu_custom_call.1} parent=1 // pred_fallthru
      _
    // Predicated region
    $region58: #{tpu_custom_call.1} parent=1 // pred_check
      _
    $region59: #{tpu_custom_call.1} parent=1 // pred_check_branch
      %90 = sbr.rel (0) target = $region61
    $region60: #{tpu_custom_call.1} parent=1 // pred_region
      %91 = dma.done [#allocation9], 1024
    $region61: #{tpu_custom_call.1} parent=1 // pred_fallthru
      _
    %v93 = vld [vmem:[#allocation2] sm:$0xff]
    %v94 = vld [vmem:[#allocation5] sm:$0xf]
    %v95 = vld [vmem:[#allocation5 + $0x4] sm:$0xf]
    %v96 = vld [vmem:[#allocation5 + $0x8] sm:$0xf]
    %v97 = vld [vmem:[#allocation5 + $0xc] sm:$0xf]
    %v98 = vld [vmem:[%s2] sm:$0x1]
    %v99 = vld [vmem:[%s3] sm:$0x1]
    %v100 = vld [vmem:[%s4] sm:$0x1]
    %v101 = vpack.c.bf16 %v93, %v93
    %v103 = vlaneseq
    %v104 = vshrl.u32 %v103, 7
    %v105 = vsub.s32 0, %v104
    %v106 = vrot.slane %v98, %v105
    %v112 = vunpack.c.l.b16 %v94
    %v113 = vunpack.c.l.b16 %v95
    %v114 = vunpack.c.l.b16 %v96
    %v115 = vunpack.c.l.b16 %v97
    %v116 = vpack.c.b16 %v113, %v112
    %v117 = vpack.c.b16 %v115, %v114
    %vm120 = vcmask 261120
    %v122 = vsel %vm120, %v101, 0
    %124 = vmatprep.subr.bf16.mxu0 0
    %125 = vmatpush1.bf16.msra.mxu0 0
    %126 = vmatprep.subr.bf16.mxu0 0
    %127 = vmatpush1.bf16.msra.mxu0 0
    %128 = vmatprep.subr.bf16.mxu0 0
    %129 = vmatpush1.bf16.msra.mxu0 0
    %130 = vmatprep.subr.bf16.mxu0 0
    %131 = vmatpush1.bf16.msra.mxu0 0
    %132 = vmatprep.subr.bf16.mxu0 0
    %133 = vmatpush1.bf16.msra.mxu0 0
    %134 = vmatprep.subr.bf16.mxu0 0
    %135 = vmatpush1.bf16.msra.mxu0 0
    %136 = vmatprep.subr.bf16.mxu0 0
    %137 = vmatpush1.bf16.msra.mxu0 %v117
    %138 = vmatprep.subr.bf16.mxu0 0
    %139 = vmatpush1.bf16.msra.mxu0 %v116
    %140 = vmatprep.subr.bf16.mxu0 0
    %141 = vmatpush2.bf16.msra.mxu0 0
    %142 = vmatprep.subr.bf16.mxu0 0
    %143 = vmatpush2.bf16.msra.mxu0 0
    %144 = vmatprep.subr.bf16.mxu0 0
    %145 = vmatpush2.bf16.msra.mxu0 0
    %146 = vmatprep.subr.bf16.mxu0 0
    %147 = vmatpush2.bf16.msra.mxu0 0
    %148 = vmatprep.subr.bf16.mxu0 0
    %149 = vmatpush2.bf16.msra.mxu0 0
    %150 = vmatprep.subr.bf16.mxu0 0
    %151 = vmatpush2.bf16.msra.mxu0 0
    %152 = vmatprep.subr.bf16.mxu0 0
    %153 = vmatpush2.bf16.msra.mxu0 0
    %154 = vmatprep.subr.bf16.mxu0 0
    %155 = vmatpush2.bf16.msra.mxu0 0
    %156 = vmatprep.mubr.bf16.mxu0 0
    %157 = vmatmul.mubr.bf16.gmra.mxu0 %v122
    %v158 = vpop.f32.mrf.mxu0
    %v159 = vadd.f32 %v106, %v158
    %v160 = vpop.f32.mrf.mxu0
    %v161 = vpop.f32.mrf.mxu0
    %v162 = vpop.f32.mrf.mxu0
    %163 = vdwg.mxu0
    %164 = vadd.xlane.f32.xlu0 %v159
    %v165 = vpop.xlane.xlu0 %164
    %v166 = vmul.f32 %v165, 0.015625
    %v167 = vmul.f32 %v159, %v159
    %168 = vadd.xlane.f32.xlu0 %v167
    %v169 = vpop.xlane.xlu0 %168
    %v170 = vmul.f32 %v169, 0.015625
    %v171 = vmul.f32 %v166, %v166
    %v172 = vsub.f32 %v170, %v171
    %v173 = vmax.f32 %v172, 0.0
    %v174 = vsub.f32 %v159, %v166
    %v175 = vadd.f32 %v173, 1e-05
    %v176 = vrsqrt.pop %v175
    %v177 = vmul.f32 %v174, %v176
    %v179 = vlaneseq
    %v180 = vshrl.u32 %v179, 7
    %v181 = vsub.s32 0, %v180
    %v182 = vrot.slane %v99, %v181
    %v184 = vmul.f32 %v177, %v182
    %v186 = vlaneseq
    %v187 = vshrl.u32 %v186, 7
    %v188 = vsub.s32 0, %v187
    %v189 = vrot.slane %v100, %v188
    %v191 = vadd.f32 %v184, %v189
    %v192 = vmul.f32 %v191, 0.5
    %v193 = vmul.f32 %v191, 0.70710677
    %v194 = verf.f32.pop %v193
    %v195 = vadd.f32 %v194, 1.0
    %v196 = vmul.f32 %v192, %v195
    %v197 = vld [vmem:[#allocation7] sm:$0xf]
    %v198 = vld [vmem:[#allocation7 + $0x4] sm:$0xf]
    %v199 = vld [vmem:[#allocation7 + $0x8] sm:$0xf]
    %v200 = vld [vmem:[#allocation7 + $0xc] sm:$0xf]
    %v201 = vld [vmem:[#allocation7 + $0x10] sm:$0xf]
    %v202 = vld [vmem:[#allocation7 + $0x14] sm:$0xf]
    %v203 = vld [vmem:[#allocation7 + $0x18] sm:$0xf]
    %v204 = vld [vmem:[#allocation7 + $0x1c] sm:$0xf]
    %v205 = vld [vmem:[#allocation7 + $0x20] sm:$0xf]
    %v206 = vld [vmem:[#allocation7 + $0x24] sm:$0xf]
    %v207 = vld [vmem:[#allocation7 + $0x28] sm:$0xf]
    %v208 = vld [vmem:[#allocation7 + $0x2c] sm:$0xf]
    %v209 = vld [vmem:[#allocation7 + $0x30] sm:$0xf]
    %v210 = vld [vmem:[#allocation7 + $0x34] sm:$0xf]
    %v211 = vld [vmem:[#allocation7 + $0x38] sm:$0xf]
    %v212 = vld [vmem:[#allocation7 + $0x3c] sm:$0xf]
    %v213 = vld [vmem:[%s6] sm:$0x1]
    %v214 = vld [vmem:[%s7] sm:$0x1]
    %v215 = vld [vmem:[%s8] sm:$0x1]
    %v216 = vpack.c.bf16 %v196, %v196
    %v218 = vlaneseq
    %v219 = vshrl.u32 %v218, 7
    %v220 = vsub.s32 0, %v219
    %v221 = vrot.slane %v213, %v220
    %v239 = vunpack.c.l.b16 %v197
    %v240 = vunpack.c.l.b16 %v198
    %v241 = vunpack.c.l.b16 %v199
    %v242 = vunpack.c.l.b16 %v200
    %v243 = vunpack.c.l.b16 %v201
    %v244 = vunpack.c.l.b16 %v202
    %v245 = vunpack.c.l.b16 %v203
    %v246 = vunpack.c.l.b16 %v204
    %v247 = vunpack.c.l.b16 %v205
    %v248 = vunpack.c.l.b16 %v206
    %v249 = vunpack.c.l.b16 %v207
    %v250 = vunpack.c.l.b16 %v208
    %v251 = vunpack.c.l.b16 %v209
    %v252 = vunpack.c.l.b16 %v210
    %v253 = vunpack.c.l.b16 %v211
    %v254 = vunpack.c.l.b16 %v212
    %v255 = vpack.c.b16 %v240, %v239
    %v256 = vpack.c.b16 %v242, %v241
    %v257 = vpack.c.b16 %v244, %v243
    %v258 = vpack.c.b16 %v246, %v245
    %v259 = vpack.c.b16 %v248, %v247
    %v260 = vpack.c.b16 %v250, %v249
    %v261 = vpack.c.b16 %v252, %v251
    %v262 = vpack.c.b16 %v254, %v253
    %271 = vmatprep.subr.bf16.mxu0 0
    %272 = vmatpush1.bf16.msra.mxu0 %v262
    %273 = vmatprep.subr.bf16.mxu0 0
    %274 = vmatpush1.bf16.msra.mxu0 %v261
    %275 = vmatprep.subr.bf16.mxu0 0
    %276 = vmatpush1.bf16.msra.mxu0 %v260
    %277 = vmatprep.subr.bf16.mxu0 0
    %278 = vmatpush1.bf16.msra.mxu0 %v259
    %279 = vmatprep.subr.bf16.mxu0 0
    %280 = vmatpush1.bf16.msra.mxu0 %v258
    %281 = vmatprep.subr.bf16.mxu0 0
    %282 = vmatpush1.bf16.msra.mxu0 %v257
    %283 = vmatprep.subr.bf16.mxu0 0
    %284 = vmatpush1.bf16.msra.mxu0 %v256
    %285 = vmatprep.subr.bf16.mxu0 0
    %286 = vmatpush1.bf16.msra.mxu0 %v255
    %287 = vmatprep.subr.bf16.mxu0 0
    %288 = vmatpush2.bf16.msra.mxu0 0
    %289 = vmatprep.subr.bf16.mxu0 0
    %290 = vmatpush2.bf16.msra.mxu0 0
    %291 = vmatprep.subr.bf16.mxu0 0
    %292 = vmatpush2.bf16.msra.mxu0 0
    %293 = vmatprep.subr.bf16.mxu0 0
    %294 = vmatpush2.bf16.msra.mxu0 0
    %295 = vmatprep.subr.bf16.mxu0 0
    %296 = vmatpush2.bf16.msra.mxu0 0
    %297 = vmatprep.subr.bf16.mxu0 0
    %298 = vmatpush2.bf16.msra.mxu0 0
    %299 = vmatprep.subr.bf16.mxu0 0
    %300 = vmatpush2.bf16.msra.mxu0 0
    %301 = vmatprep.subr.bf16.mxu0 0
    %302 = vmatpush2.bf16.msra.mxu0 0
    %303 = vmatprep.mubr.bf16.mxu0 0
    %304 = vmatmul.mubr.bf16.gmra.mxu0 %v216
    %v305 = vpop.f32.mrf.mxu0
    %v306 = vadd.f32 %v221, %v305
    %v307 = vpop.f32.mrf.mxu0
    %v308 = vpop.f32.mrf.mxu0
    %v309 = vpop.f32.mrf.mxu0
    %310 = vdwg.mxu0
    %311 = vadd.xlane.f32.xlu0 %v306
    %v312 = vpop.xlane.xlu0 %311
    %v313 = vmul.f32 %v312, 0.03125
    %v314 = vmul.f32 %v306, %v306
    %315 = vadd.xlane.f32.xlu0 %v314
    %v316 = vpop.xlane.xlu0 %315
    %v317 = vmul.f32 %v316, 0.03125
    %v318 = vmul.f32 %v313, %v313
    %v319 = vsub.f32 %v317, %v318
    %v320 = vmax.f32 %v319, 0.0
    %v321 = vsub.f32 %v306, %v313
    %v322 = vadd.f32 %v320, 1e-05
    %v323 = vrsqrt.pop %v322
    %v324 = vmul.f32 %v321, %v323
    %v326 = vlaneseq
    %v327 = vshrl.u32 %v326, 7
    %v328 = vsub.s32 0, %v327
    %v329 = vrot.slane %v214, %v328
    %v331 = vmul.f32 %v324, %v329
    %v333 = vlaneseq
    %v334 = vshrl.u32 %v333, 7
    %v335 = vsub.s32 0, %v334
    %v336 = vrot.slane %v215, %v335
    %v338 = vadd.f32 %v331, %v336
    %v339 = vmul.f32 %v338, 0.5
    %v340 = vmul.f32 %v338, 0.70710677
    %v341 = verf.f32.pop %v340
    %v342 = vadd.f32 %v341, 1.0
    %v343 = vmul.f32 %v339, %v342
    %v344 = vpack.c.bf16 %v343, %v343
    %v345 = vld [vmem:[#allocation8] sm:$0xf]
    %v346 = vld [vmem:[#allocation8 + $0x4] sm:$0xf]
    %v347 = vld [vmem:[#allocation8 + $0x8] sm:$0xf]
    %v348 = vld [vmem:[#allocation8 + $0xc] sm:$0xf]
    %v349 = vld [vmem:[#allocation8 + $0x10] sm:$0xf]
    %v350 = vld [vmem:[#allocation8 + $0x14] sm:$0xf]
    %v351 = vld [vmem:[#allocation8 + $0x18] sm:$0xf]
    %v352 = vld [vmem:[#allocation8 + $0x1c] sm:$0xf]
    %v353 = vld [vmem:[#allocation8 + $0x20] sm:$0xf]
    %v354 = vld [vmem:[#allocation8 + $0x24] sm:$0xf]
    %v355 = vld [vmem:[#allocation8 + $0x28] sm:$0xf]
    %v356 = vld [vmem:[#allocation8 + $0x2c] sm:$0xf]
    %v357 = vld [vmem:[#allocation8 + $0x30] sm:$0xf]
    %v358 = vld [vmem:[#allocation8 + $0x34] sm:$0xf]
    %v359 = vld [vmem:[#allocation8 + $0x38] sm:$0xf]
    %v360 = vld [vmem:[#allocation8 + $0x3c] sm:$0xf]
    %v361 = vld [vmem:[%s10] sm:$0x1]
    %v363 = vlaneseq
    %v364 = vshrl.u32 %v363, 7
    %v365 = vsub.s32 0, %v364
    %v366 = vrot.slane %v361, %v365
    %v384 = vunpack.c.l.b16 %v345
    %v385 = vunpack.c.l.b16 %v346
    %v386 = vunpack.c.l.b16 %v347
    %v387 = vunpack.c.l.b16 %v348
    %v388 = vunpack.c.l.b16 %v349
    %v389 = vunpack.c.l.b16 %v350
    %v390 = vunpack.c.l.b16 %v351
    %v391 = vunpack.c.l.b16 %v352
    %v392 = vunpack.c.l.b16 %v353
    %v393 = vunpack.c.l.b16 %v354
    %v394 = vunpack.c.l.b16 %v355
    %v395 = vunpack.c.l.b16 %v356
    %v396 = vunpack.c.l.b16 %v357
    %v397 = vunpack.c.l.b16 %v358
    %v398 = vunpack.c.l.b16 %v359
    %v399 = vunpack.c.l.b16 %v360
    %v400 = vpack.c.b16 %v385, %v384
    %v401 = vpack.c.b16 %v387, %v386
    %v402 = vpack.c.b16 %v389, %v388
    %v403 = vpack.c.b16 %v391, %v390
    %v404 = vpack.c.b16 %v393, %v392
    %v405 = vpack.c.b16 %v395, %v394
    %v406 = vpack.c.b16 %v397, %v396
    %v407 = vpack.c.b16 %v399, %v398
    %416 = vmatprep.subr.bf16.mxu0 0
    %417 = vmatpush1.bf16.msra.mxu0 %v407
    %418 = vmatprep.subr.bf16.mxu0 0
    %419 = vmatpush1.bf16.msra.mxu0 %v406
    %420 = vmatprep.subr.bf16.mxu0 0
    %421 = vmatpush1.bf16.msra.mxu0 %v405
    %422 = vmatprep.subr.bf16.mxu0 0
    %423 = vmatpush1.bf16.msra.mxu0 %v404
    %424 = vmatprep.subr.bf16.mxu0 0
    %425 = vmatpush1.bf16.msra.mxu0 %v403
    %426 = vmatprep.subr.bf16.mxu0 0
    %427 = vmatpush1.bf16.msra.mxu0 %v402
    %428 = vmatprep.subr.bf16.mxu0 0
    %429 = vmatpush1.bf16.msra.mxu0 %v401
    %430 = vmatprep.subr.bf16.mxu0 0
    %431 = vmatpush1.bf16.msra.mxu0 %v400
    %432 = vmatprep.subr.bf16.mxu0 0
    %433 = vmatpush2.bf16.msra.mxu0 0
    %434 = vmatprep.subr.bf16.mxu0 0
    %435 = vmatpush2.bf16.msra.mxu0 0
    %436 = vmatprep.subr.bf16.mxu0 0
    %437 = vmatpush2.bf16.msra.mxu0 0
    %438 = vmatprep.subr.bf16.mxu0 0
    %439 = vmatpush2.bf16.msra.mxu0 0
    %440 = vmatprep.subr.bf16.mxu0 0
    %441 = vmatpush2.bf16.msra.mxu0 0
    %442 = vmatprep.subr.bf16.mxu0 0
    %443 = vmatpush2.bf16.msra.mxu0 0
    %444 = vmatprep.subr.bf16.mxu0 0
    %445 = vmatpush2.bf16.msra.mxu0 0
    %446 = vmatprep.subr.bf16.mxu0 0
    %447 = vmatpush2.bf16.msra.mxu0 0
    %448 = vmatprep.mubr.bf16.mxu0 0
    %449 = vmatmul.mubr.bf16.gmra.mxu0 %v344
    %v450 = vpop.f32.mrf.mxu0
    %v451 = vadd.f32 %v366, %v450
    %v452 = vpop.f32.mrf.mxu0
    %v453 = vpop.f32.mrf.mxu0
    %v454 = vpop.f32.mrf.mxu0
    %455 = vdwg.mxu0
    %456 = vst [vmem:[#allocation10] sm:$0xff] %v451
    // Predicated region
    $region62: #{tpu_custom_call.1} parent=1 // pred_check
      _
    $region63: #{tpu_custom_call.1} parent=1 // pred_check_branch
      %458 = sbr.rel (0) target = $region65
    $region64: #{tpu_custom_call.1} parent=1 // pred_region
      %s460 = ssub.s32 128, 128
      %461 = vsyncadd [#allocation4], %s460
      %s463 = sshll.u32 [#allocation10], 4
      %s464 = int_to_ptr.vmem [resolvable:$true] %s463
      %466 = dma.vmem_to_hbm [thread:$0]  %s464, 128, %s11, [#allocation4]
    $region65: #{tpu_custom_call.1} parent=1 // pred_fallthru
      _
    // Predicated region
    $region66: #{tpu_custom_call.1} parent=1 // pred_check
      _
    $region67: #{tpu_custom_call.1} parent=1 // pred_check_branch
      %468 = sbr.rel (0) target = $region69
    $region68: #{tpu_custom_call.1} parent=1 // pred_region
      %469 = dma.done [#allocation4], 128
    $region69: #{tpu_custom_call.1} parent=1 // pred_fallthru
      _
    %470 = vsyncpa [#allocation3], 1
    %471 = vsyncpa [#allocation6], 1
    %472 = vsyncpa [#allocation9], 1
    %473 = vsyncpa [#allocation4], 1

</llo_original>
